<compile_context>
chip_gen: v7x
topology: tpu7x:2x2x1
jax: 0.10.0
libtpu: 0.0.40
codegen_flags: <defaults>
</compile_context>

<pallas_src>
import jax
import jax.numpy as jnp
import numpy as np
from jax import lax
from jax.experimental import pallas as pl
from jax.experimental.pallas import tpu as pltpu

EPS = 1e-5  # torch.nn.InstanceNorm2d default eps (affine=False, biased variance)


def _make_resblock_kernel(C, H, W):
    HW = H * W
    KH = KW = 3
    PAD = W + 1  # flat zero slack on each side (one image row + 1 for the corner tap)

    def kernel(x_ref, w0_ref, b0_ref, w1_ref, b1_ref, o_ref):
        # lane masks that zero the wrapped-around left/right-edge taps
        col = lax.broadcasted_iota(jnp.int32, (1, HW), 1) % W
        mask_l = (col != 0).astype(jnp.float32)        # for kx == 0 taps
        mask_r = (col != (W - 1)).astype(jnp.float32)  # for kx == 2 taps
        zpad = jnp.zeros((C, PAD), jnp.float32)
        inv_n = 1.0 / HW

        def conv_in_act(v, w_ref, b_ref, relu):
            # v: (C, HW) f32.  Flat zero-padded image: row r of the input lives at
            # flat offset (r+1)*W + 1, so tap (ky,kx) is the slice starting at ky*W+kx.
            padded = jnp.concatenate([zpad, v, zpad], axis=1)  # (C, HW + 2W + 2)
            cols = []
            for ky in range(KH):
                for kx in range(KW):
                    start = ky * W + kx
                    patch = padded[:, start:start + HW]        # (C, HW) lane shift
                    if kx == 0:
                        patch = patch * mask_l
                    elif kx == KW - 1:
                        patch = patch * mask_r
                    cols.append(patch)
            # im2col matrix: one well-shaped MXU matmul, bf16 operands, f32 accumulate
            patches = jnp.concatenate(cols, axis=0).astype(jnp.bfloat16)  # (9C, HW)
            acc = jnp.dot(w_ref[...], patches,
                          preferred_element_type=jnp.float32)             # (C, HW) f32
            acc = acc + b_ref[...]                                        # (C,1) bias
            # one-pass instance norm (biased variance), per channel over HW
            mean = jnp.sum(acc, axis=1, keepdims=True) * inv_n
            var = jnp.sum(acc * acc, axis=1, keepdims=True) * inv_n - mean * mean
            acc = (acc - mean) * lax.rsqrt(var + EPS)
            if relu:
                acc = jnp.maximum(acc, 0.0)
            return acc

        x = x_ref[0]                                       # (C, HW) f32 (also residual)
        h = conv_in_act(x, w0_ref, b0_ref, relu=True)      # conv1 + IN + ReLU
        out = conv_in_act(h, w1_ref, b1_ref, relu=False)   # conv2 + IN
        o_ref[0] = out + x                                 # residual add

    return kernel


def res_block(x_nchw, w0, b0, w1, b1):
    """ResBlock(dim, norm='in', activation='relu', pad_type='zero') forward.
       x: (N, C, H, W) f32 (NCHW).  w*: (C, C, 3, 3) PyTorch OIHW.  b*: (C,)."""
    N, C, H, W = x_nchw.shape
    HW = H * W
    kernel = _make_resblock_kernel(C, H, W)

    def pack_w(w):  # OIHW -> (Cout, KH*KW*Cin) bf16, tap-major (ky, kx, cin)
        return jnp.transpose(w, (0, 2, 3, 1)).reshape(C, 9 * C).astype(jnp.bfloat16)

    x_flat = x_nchw.reshape(N, C, HW).astype(jnp.float32)
    args = (x_flat,
            pack_w(w0), b0.reshape(C, 1).astype(jnp.float32),
            pack_w(w1), b1.reshape(C, 1).astype(jnp.float32))

    out = pl.pallas_call(
        kernel,
        out_shape=jax.ShapeDtypeStruct((N, C, HW), jnp.float32),
        grid=(N,),
        in_specs=[
            pl.BlockSpec((1, C, HW), lambda n: (n, 0, 0)),      # activation (per sample)
            pl.BlockSpec((C, 9 * C), lambda n: (0, 0)),         # packed weight 0 (resident)
            pl.BlockSpec((C, 1), lambda n: (0, 0)),             # bias 0
            pl.BlockSpec((C, 9 * C), lambda n: (0, 0)),         # packed weight 1 (resident)
            pl.BlockSpec((C, 1), lambda n: (0, 0)),             # bias 1
        ],
        out_specs=pl.BlockSpec((1, C, HW), lambda n: (n, 0, 0)),
        compiler_params=pltpu.CompilerParams(dimension_semantics=("parallel",)),
    )(*args)
    return out.reshape(N, C, H, W)


res_block_jit = jax.jit(res_block)


# ----------------------------------------------------------------------------
# Pure-JAX reference (verification only)
# ----------------------------------------------------------------------------
def ref_resblock(x, w0, b0, w1, b1):
    def conv_in(h, w, b, relu):
        out = lax.conv_general_dilated(
            h, w, window_strides=(1, 1), padding=((1, 1), (1, 1)),
            dimension_numbers=('NCHW', 'OIHW', 'NCHW'))
        out = out + b.reshape(1, -1, 1, 1)
        mean = jnp.mean(out, axis=(2, 3), keepdims=True)
        var = jnp.mean((out - mean) ** 2, axis=(2, 3), keepdims=True)
        out = (out - mean) * lax.rsqrt(var + EPS)
        if relu:
            out = jnp.maximum(out, 0.0)
        return out

    h = conv_in(x, w0, b0, True)
    out = conv_in(h, w1, b1, False)
    return out + x


if __name__ == "__main__":
    key = jax.random.PRNGKey(0)
    k1, k2, k3, k4, k5 = jax.random.split(key, 5)

    # Small shapes consistent with ResBlock(dim) on a decoder feature map.
    N, C, H, W = 2, 32, 16, 16
    x = jax.random.normal(k1, (N, C, H, W), jnp.float32)                 # NCHW input
    w0 = jax.random.normal(k2, (C, C, 3, 3), jnp.float32) / np.sqrt(9 * C)
    b0 = 0.1 * jax.random.normal(k3, (C,), jnp.float32)
    w1 = jax.random.normal(k4, (C, C, 3, 3), jnp.float32) / np.sqrt(9 * C)
    b1 = 0.1 * jax.random.normal(k5, (C,), jnp.float32)

    out = jax.block_until_ready(res_block_jit(x, w0, b0, w1, b1))
    assert out.shape == (N, C, H, W), out.shape

    ref = ref_resblock(x, w0, b0, w1, b1)
    np.testing.assert_allclose(np.asarray(out), np.asarray(ref), atol=3e-2, rtol=3e-2)

    print("KERNEL_OK")
</pallas_src>

<mosaic_0001>
module attributes {stable_mosaic.version = 11 : i64} {
  func.func @kernel(%arg0: i32, %arg1: memref<1x32x256xf32, #tpu.memory_space<vmem>>, %arg2: memref<32x288xbf16, #tpu.memory_space<vmem>>, %arg3: memref<32x1xf32, #tpu.memory_space<vmem>>, %arg4: memref<32x288xbf16, #tpu.memory_space<vmem>>, %arg5: memref<32x1xf32, #tpu.memory_space<vmem>>, %arg6: memref<1x32x256xf32, #tpu.memory_space<vmem>>) attributes {dimension_semantics = [#tpu.dimension_semantics<parallel>], iteration_bounds = array<i64: 2>, scalar_prefetch = 0 : i64, scratch_operands = 0 : i64, tpu.core_type = #tpu.core_type<tc>, window_params = [{transform_indices = @transform_0, window_bounds = array<i64: 1, 32, 256>}, {pipeline_mode = #tpu.pipeline_mode<synchronous>, transform_indices = @transform_1, window_bounds = array<i64: 32, 288>}, {pipeline_mode = #tpu.pipeline_mode<synchronous>, transform_indices = @transform_2, window_bounds = array<i64: 32, 1>}, {pipeline_mode = #tpu.pipeline_mode<synchronous>, transform_indices = @transform_3, window_bounds = array<i64: 32, 288>}, {pipeline_mode = #tpu.pipeline_mode<synchronous>, transform_indices = @transform_4, window_bounds = array<i64: 32, 1>}, {transform_indices = @transform_5, window_bounds = array<i64: 1, 32, 256>}]} {
    %0 = tpu.iota {dimensions = array<i32: 1>} : vector<1x256xi32>
    %c16_i32 = arith.constant 16 : i32
    %c0_i32 = arith.constant 0 : i32
    %1 = arith.cmpi eq, %c16_i32, %c0_i32 : i32
    %c1_i32 = arith.constant 1 : i32
    %2 = arith.select %1, %c1_i32, %c16_i32 : i32
    %3 = vector.broadcast %2 : i32 to vector<1x256xi32>
    %4 = arith.remsi %0, %3 : vector<1x256xi32>
    %c0_i32_0 = arith.constant 0 : i32
    %5 = vector.broadcast %c0_i32_0 : i32 to vector<1x256xi32>
    %6 = arith.cmpi ne, %4, %5 : vector<1x256xi32>
    %c0_i32_1 = arith.constant 0 : i32
    %7 = vector.broadcast %c0_i32_1 : i32 to vector<1x256xi32>
    %8 = arith.cmpi slt, %4, %7 : vector<1x256xi32>
    %c0_i32_2 = arith.constant 0 : i32
    %9 = arith.cmpi slt, %2, %c0_i32_2 : i32
    %10 = vector.broadcast %9 : i1 to vector<1x256xi1>
    %11 = vector.broadcast %10 : vector<1x256xi1> to vector<1x256xi1>
    %12 = arith.xori %8, %11 : vector<1x256xi1>
    %13 = arith.andi %12, %6 : vector<1x256xi1>
    %14 = vector.broadcast %2 : i32 to vector<1x256xi32>
    %15 = arith.addi %4, %14 : vector<1x256xi32>
    %16 = arith.select %13, %15, %4 : vector<1x256xi1>, vector<1x256xi32>
    %c0_i32_3 = arith.constant 0 : i32
    %17 = vector.broadcast %c0_i32_3 : i32 to vector<1x256xi32>
    %18 = arith.cmpi ne, %16, %17 : vector<1x256xi32>
    %19 = arith.extui %18 : vector<1x256xi1> to vector<1x256xi32>
    %20 = arith.sitofp %19 : vector<1x256xi32> to vector<1x256xf32>
    %c15_i32 = arith.constant 15 : i32
    %21 = vector.broadcast %c15_i32 : i32 to vector<1x256xi32>
    %22 = arith.cmpi ne, %16, %21 : vector<1x256xi32>
    %23 = arith.extui %22 : vector<1x256xi1> to vector<1x256xi32>
    %24 = arith.sitofp %23 : vector<1x256xi32> to vector<1x256xf32>
    %cst = arith.constant 0.000000e+00 : f32
    %25 = vector.broadcast %cst : f32 to vector<32x17xf32>
    %c0 = arith.constant 0 : index
    %c0_4 = arith.constant 0 : index
    %c0_5 = arith.constant 0 : index
    %26 = vector.load %arg1[%c0, %c0_4, %c0_5] : memref<1x32x256xf32, #tpu.memory_space<vmem>>, vector<1x32x256xf32>
    %27 = vector.shape_cast %26 : vector<1x32x256xf32> to vector<32x256xf32>
    %28 = tpu.concatenate %25, %27, %25 in 1 : vector<32x17xf32>, vector<32x256xf32>, vector<32x17xf32> -> vector<32x290xf32>
    %29 = vector.extract_strided_slice %28 {offsets = [0, 0], sizes = [32, 256], strides = [1, 1]} : vector<32x290xf32> to vector<32x256xf32>
    %30 = vector.broadcast %20 : vector<1x256xf32> to vector<32x256xf32>
    %31 = arith.mulf %29, %30 : vector<32x256xf32>
    %32 = vector.extract_strided_slice %28 {offsets = [0, 1], sizes = [32, 256], strides = [1, 1]} : vector<32x290xf32> to vector<32x256xf32>
    %33 = vector.extract_strided_slice %28 {offsets = [0, 2], sizes = [32, 256], strides = [1, 1]} : vector<32x290xf32> to vector<32x256xf32>
    %34 = vector.broadcast %24 : vector<1x256xf32> to vector<32x256xf32>
    %35 = arith.mulf %33, %34 : vector<32x256xf32>
    %36 = vector.extract_strided_slice %28 {offsets = [0, 16], sizes = [32, 256], strides = [1, 1]} : vector<32x290xf32> to vector<32x256xf32>
    %37 = vector.broadcast %20 : vector<1x256xf32> to vector<32x256xf32>
    %38 = arith.mulf %36, %37 : vector<32x256xf32>
    %39 = vector.extract_strided_slice %28 {offsets = [0, 17], sizes = [32, 256], strides = [1, 1]} : vector<32x290xf32> to vector<32x256xf32>
    %40 = vector.extract_strided_slice %28 {offsets = [0, 18], sizes = [32, 256], strides = [1, 1]} : vector<32x290xf32> to vector<32x256xf32>
    %41 = vector.broadcast %24 : vector<1x256xf32> to vector<32x256xf32>
    %42 = arith.mulf %40, %41 : vector<32x256xf32>
    %43 = vector.extract_strided_slice %28 {offsets = [0, 32], sizes = [32, 256], strides = [1, 1]} : vector<32x290xf32> to vector<32x256xf32>
    %44 = vector.broadcast %20 : vector<1x256xf32> to vector<32x256xf32>
    %45 = arith.mulf %43, %44 : vector<32x256xf32>
    %46 = vector.extract_strided_slice %28 {offsets = [0, 33], sizes = [32, 256], strides = [1, 1]} : vector<32x290xf32> to vector<32x256xf32>
    %47 = vector.extract_strided_slice %28 {offsets = [0, 34], sizes = [32, 256], strides = [1, 1]} : vector<32x290xf32> to vector<32x256xf32>
    %48 = vector.broadcast %24 : vector<1x256xf32> to vector<32x256xf32>
    %49 = arith.mulf %47, %48 : vector<32x256xf32>
    %50 = tpu.concatenate %31, %32, %35, %38, %39, %42, %45, %46, %49 in 0 : vector<32x256xf32>, vector<32x256xf32>, vector<32x256xf32>, vector<32x256xf32>, vector<32x256xf32>, vector<32x256xf32>, vector<32x256xf32>, vector<32x256xf32>, vector<32x256xf32> -> vector<288x256xf32>
    %51 = arith.truncf %50 : vector<288x256xf32> to vector<288x256xbf16>
    %c0_6 = arith.constant 0 : index
    %c0_7 = arith.constant 0 : index
    %52 = vector.load %arg2[%c0_6, %c0_7] : memref<32x288xbf16, #tpu.memory_space<vmem>>, vector<32x288xbf16>
    %cst_8 = arith.constant dense<0.000000e+00> : vector<32x256xf32>
    %53 = tpu.matmul %52, %51, %cst_8 {dimension_numbers = #tpu.dot_dimension_numbers<[1], [0], [0], [1], [0, 0, 1, 1], [], []>} : vector<32x288xbf16>, vector<288x256xbf16>, vector<32x256xf32> -> vector<32x256xf32>
    %c0_9 = arith.constant 0 : index
    %c0_10 = arith.constant 0 : index
    %54 = vector.load %arg3[%c0_9, %c0_10] : memref<32x1xf32, #tpu.memory_space<vmem>>, vector<32x1xf32>
    %55 = vector.broadcast %54 : vector<32x1xf32> to vector<32x256xf32>
    %56 = arith.addf %53, %55 : vector<32x256xf32>
    %cst_11 = arith.constant dense<0.000000e+00> : vector<32xf32>
    %57 = vector.multi_reduction <add>, %56, %cst_11 [1] : vector<32x256xf32> to vector<32xf32>
    %58 = vector.shape_cast %57 : vector<32xf32> to vector<32x1xf32>
    %cst_12 = arith.constant 3.906250e-03 : f32
    %59 = vector.broadcast %cst_12 : f32 to vector<32x1xf32>
    %60 = arith.mulf %58, %59 : vector<32x1xf32>
    %61 = arith.mulf %56, %56 : vector<32x256xf32>
    %cst_13 = arith.constant dense<0.000000e+00> : vector<32xf32>
    %62 = vector.multi_reduction <add>, %61, %cst_13 [1] : vector<32x256xf32> to vector<32xf32>
    %63 = vector.shape_cast %62 : vector<32xf32> to vector<32x1xf32>
    %cst_14 = arith.constant 3.906250e-03 : f32
    %64 = vector.broadcast %cst_14 : f32 to vector<32x1xf32>
    %65 = arith.mulf %63, %64 : vector<32x1xf32>
    %66 = arith.mulf %60, %60 : vector<32x1xf32>
    %67 = arith.subf %65, %66 : vector<32x1xf32>
    %68 = vector.broadcast %60 : vector<32x1xf32> to vector<32x256xf32>
    %69 = arith.subf %56, %68 : vector<32x256xf32>
    %cst_15 = arith.constant 9.99999974E-6 : f32
    %70 = vector.broadcast %cst_15 : f32 to vector<32x1xf32>
    %71 = arith.addf %67, %70 : vector<32x1xf32>
    %72 = math.rsqrt %71 : vector<32x1xf32>
    %73 = vector.broadcast %72 : vector<32x1xf32> to vector<32x256xf32>
    %74 = arith.mulf %69, %73 : vector<32x256xf32>
    %cst_16 = arith.constant 0.000000e+00 : f32
    %75 = vector.broadcast %cst_16 : f32 to vector<32x256xf32>
    %76 = arith.maximumf %74, %75 : vector<32x256xf32>
    %77 = tpu.concatenate %25, %76, %25 in 1 : vector<32x17xf32>, vector<32x256xf32>, vector<32x17xf32> -> vector<32x290xf32>
    %78 = vector.extract_strided_slice %77 {offsets = [0, 0], sizes = [32, 256], strides = [1, 1]} : vector<32x290xf32> to vector<32x256xf32>
    %79 = vector.broadcast %20 : vector<1x256xf32> to vector<32x256xf32>
    %80 = arith.mulf %78, %79 : vector<32x256xf32>
    %81 = vector.extract_strided_slice %77 {offsets = [0, 1], sizes = [32, 256], strides = [1, 1]} : vector<32x290xf32> to vector<32x256xf32>
    %82 = vector.extract_strided_slice %77 {offsets = [0, 2], sizes = [32, 256], strides = [1, 1]} : vector<32x290xf32> to vector<32x256xf32>
    %83 = vector.broadcast %24 : vector<1x256xf32> to vector<32x256xf32>
    %84 = arith.mulf %82, %83 : vector<32x256xf32>
    %85 = vector.extract_strided_slice %77 {offsets = [0, 16], sizes = [32, 256], strides = [1, 1]} : vector<32x290xf32> to vector<32x256xf32>
    %86 = vector.broadcast %20 : vector<1x256xf32> to vector<32x256xf32>
    %87 = arith.mulf %85, %86 : vector<32x256xf32>
    %88 = vector.extract_strided_slice %77 {offsets = [0, 17], sizes = [32, 256], strides = [1, 1]} : vector<32x290xf32> to vector<32x256xf32>
    %89 = vector.extract_strided_slice %77 {offsets = [0, 18], sizes = [32, 256], strides = [1, 1]} : vector<32x290xf32> to vector<32x256xf32>
    %90 = vector.broadcast %24 : vector<1x256xf32> to vector<32x256xf32>
    %91 = arith.mulf %89, %90 : vector<32x256xf32>
    %92 = vector.extract_strided_slice %77 {offsets = [0, 32], sizes = [32, 256], strides = [1, 1]} : vector<32x290xf32> to vector<32x256xf32>
    %93 = vector.broadcast %20 : vector<1x256xf32> to vector<32x256xf32>
    %94 = arith.mulf %92, %93 : vector<32x256xf32>
    %95 = vector.extract_strided_slice %77 {offsets = [0, 33], sizes = [32, 256], strides = [1, 1]} : vector<32x290xf32> to vector<32x256xf32>
    %96 = vector.extract_strided_slice %77 {offsets = [0, 34], sizes = [32, 256], strides = [1, 1]} : vector<32x290xf32> to vector<32x256xf32>
    %97 = vector.broadcast %24 : vector<1x256xf32> to vector<32x256xf32>
    %98 = arith.mulf %96, %97 : vector<32x256xf32>
    %99 = tpu.concatenate %80, %81, %84, %87, %88, %91, %94, %95, %98 in 0 : vector<32x256xf32>, vector<32x256xf32>, vector<32x256xf32>, vector<32x256xf32>, vector<32x256xf32>, vector<32x256xf32>, vector<32x256xf32>, vector<32x256xf32>, vector<32x256xf32> -> vector<288x256xf32>
    %100 = arith.truncf %99 : vector<288x256xf32> to vector<288x256xbf16>
    %c0_17 = arith.constant 0 : index
    %c0_18 = arith.constant 0 : index
    %101 = vector.load %arg4[%c0_17, %c0_18] : memref<32x288xbf16, #tpu.memory_space<vmem>>, vector<32x288xbf16>
    %cst_19 = arith.constant dense<0.000000e+00> : vector<32x256xf32>
    %102 = tpu.matmul %101, %100, %cst_19 {dimension_numbers = #tpu.dot_dimension_numbers<[1], [0], [0], [1], [0, 0, 1, 1], [], []>} : vector<32x288xbf16>, vector<288x256xbf16>, vector<32x256xf32> -> vector<32x256xf32>
    %c0_20 = arith.constant 0 : index
    %c0_21 = arith.constant 0 : index
    %103 = vector.load %arg5[%c0_20, %c0_21] : memref<32x1xf32, #tpu.memory_space<vmem>>, vector<32x1xf32>
    %104 = vector.broadcast %103 : vector<32x1xf32> to vector<32x256xf32>
    %105 = arith.addf %102, %104 : vector<32x256xf32>
    %cst_22 = arith.constant dense<0.000000e+00> : vector<32xf32>
    %106 = vector.multi_reduction <add>, %105, %cst_22 [1] : vector<32x256xf32> to vector<32xf32>
    %107 = vector.shape_cast %106 : vector<32xf32> to vector<32x1xf32>
    %cst_23 = arith.constant 3.906250e-03 : f32
    %108 = vector.broadcast %cst_23 : f32 to vector<32x1xf32>
    %109 = arith.mulf %107, %108 : vector<32x1xf32>
    %110 = arith.mulf %105, %105 : vector<32x256xf32>
    %cst_24 = arith.constant dense<0.000000e+00> : vector<32xf32>
    %111 = vector.multi_reduction <add>, %110, %cst_24 [1] : vector<32x256xf32> to vector<32xf32>
    %112 = vector.shape_cast %111 : vector<32xf32> to vector<32x1xf32>
    %cst_25 = arith.constant 3.906250e-03 : f32
    %113 = vector.broadcast %cst_25 : f32 to vector<32x1xf32>
    %114 = arith.mulf %112, %113 : vector<32x1xf32>
    %115 = arith.mulf %109, %109 : vector<32x1xf32>
    %116 = arith.subf %114, %115 : vector<32x1xf32>
    %117 = vector.broadcast %109 : vector<32x1xf32> to vector<32x256xf32>
    %118 = arith.subf %105, %117 : vector<32x256xf32>
    %cst_26 = arith.constant 9.99999974E-6 : f32
    %119 = vector.broadcast %cst_26 : f32 to vector<32x1xf32>
    %120 = arith.addf %116, %119 : vector<32x1xf32>
    %121 = math.rsqrt %120 : vector<32x1xf32>
    %122 = vector.broadcast %121 : vector<32x1xf32> to vector<32x256xf32>
    %123 = arith.mulf %118, %122 : vector<32x256xf32>
    %124 = arith.addf %123, %27 : vector<32x256xf32>
    %c0_27 = arith.constant 0 : index
    %c0_28 = arith.constant 0 : index
    %c0_29 = arith.constant 0 : index
    %125 = vector.load %arg6[%c0_27, %c0_28, %c0_29] : memref<1x32x256xf32, #tpu.memory_space<vmem>>, vector<1x32x256xf32>
    %126 = vector.shape_cast %125 : vector<1x32x256xf32> to vector<32x256xf32>
    %127 = vector.shape_cast %124 : vector<32x256xf32> to vector<1x32x256xf32>
    tpu.vector_store %arg6[%c0_27, %c0_28, %c0_29], %127 {strides = array<i32>} : memref<1x32x256xf32, #tpu.memory_space<vmem>>, vector<1x32x256xf32>,
    return
  }
  func.func @transform_0(%arg0: i32) -> (i32, i32, i32) {
    %c0_i32 = arith.constant 0 : i32
    %c0_i32_0 = arith.constant 0 : i32
    %c0_i32_1 = arith.constant 0 : i32
    return %arg0, %c0_i32, %c0_i32_0 : i32, i32, i32
  }
  func.func @transform_1(%arg0: i32) -> (i32, i32) {
    %c0_i32 = arith.constant 0 : i32
    %c0_i32_0 = arith.constant 0 : i32
    %c0_i32_1 = arith.constant 0 : i32
    return %c0_i32, %c0_i32_0 : i32, i32
  }
  func.func @transform_2(%arg0: i32) -> (i32, i32) {
    %c0_i32 = arith.constant 0 : i32
    %c0_i32_0 = arith.constant 0 : i32
    %c0_i32_1 = arith.constant 0 : i32
    return %c0_i32, %c0_i32_0 : i32, i32
  }
  func.func @transform_3(%arg0: i32) -> (i32, i32) {
    %c0_i32 = arith.constant 0 : i32
    %c0_i32_0 = arith.constant 0 : i32
    %c0_i32_1 = arith.constant 0 : i32
    return %c0_i32, %c0_i32_0 : i32, i32
  }
  func.func @transform_4(%arg0: i32) -> (i32, i32) {
    %c0_i32 = arith.constant 0 : i32
    %c0_i32_0 = arith.constant 0 : i32
    %c0_i32_1 = arith.constant 0 : i32
    return %c0_i32, %c0_i32_0 : i32, i32
  }
  func.func @transform_5(%arg0: i32) -> (i32, i32, i32) {
    %c0_i32 = arith.constant 0 : i32
    %c0_i32_0 = arith.constant 0 : i32
    %c0_i32_1 = arith.constant 0 : i32
    return %arg0, %c0_i32, %c0_i32_0 : i32, i32, i32
  }
}

</mosaic_0001>

<llo_original>
// kernel: res_block.1
$region0: #{res_block.1}
  #allocation0 [shape = 'u32[]', space=smem, size = 0x4, offset = 0x4, fixed_abs, tag = 'smem constant byte address 0x4 - core index']
  #allocation1 [shape = 'u32[144,128]{1,0:T(1,128)}', space=vmem, size = 0x12000, scoped, tag = 'internal scratch']
  %s0 = inlined_call_operand.vmem [shape: f32[2,32,256], index: 0, kind: input, shape index: {}]
  %s1 = inlined_call_operand.vmem [shape: bf16[32,288], index: 1, kind: input, shape index: {}]
  %s2 = inlined_call_operand.vmem [shape: f32[32,1], index: 2, kind: input, shape index: {}]
  %s3 = inlined_call_operand.vmem [shape: bf16[32,288], index: 3, kind: input, shape index: {}]
  %s4 = inlined_call_operand.vmem [shape: f32[32,1], index: 4, kind: input, shape index: {}]
  %s5 = inlined_call_operand.vmem [shape: f32[2,32,256], index: 5, kind: output, shape index: {}]
  %s6 = sld [smem:[#allocation0]]
  $region53: #{res_block.1} parent=0
    _
  %s8 = ssub.s32 1, %s6
  %s9 = scalar_select 0, %s8, %s6
  loop: start=0, step=1, limit=4
  $region2: #{res_block.1} parent=0 // loop_pre_header
    _
  $region3: #{res_block.1} parent=0 // loop_header
    %s11 = sphi 0, %s15
    %p12 = scmp.ge.s32.totalorder %s11, 4
    %s21 = sphi 0, %s23
    %s24 = sphi 0, %s21
    %s25 = sphi 0, %s24
    %s41 = sphi 0, %s25
    %s45 = sphi 0, %s45
    %s47 = sphi 0, %s45
    %s48 = sphi 0, %s47
    %s62 = sphi 0, %s48
    %s66 = sphi 0, %s66
    %s68 = sphi 0, %s66
    %s69 = sphi 0, %s68
    %s83 = sphi 0, %s69
    %s87 = sphi 0, %s87
    %s89 = sphi 0, %s87
    %s90 = sphi 0, %s89
    %s104 = sphi 0, %s90
    %s108 = sphi 0, %s108
    %s110 = sphi 0, %s108
    %s111 = sphi 0, %s110
    %s125 = sphi 0, %s111
    %s131 = sphi 0, %s133
    %s134 = sphi 0, %s131
    %s135 = sphi 0, %s134
    %s151 = sphi 0, %s135
  $region4: #{res_block.1} parent=0 // loop_header_branch
    %14 = sbr.rel (%p12) target = $region8
  $region5: #{res_block.1} parent=0 // loop_body
    %s16 = ssub.s32 %s11, 1
    %s17 = ssub.s32 %s11, 2
    %s18 = sadd.s32 %s11, 1
    %s19 = ssub.s32 %s11, %s18
    %p20 = scmp.eq.s32.totalorder %s19, 0
    %s22 = sadd.s32 %s21, 1
    %s23 = scalar_select %p20, %s21, %s22
    %p26 = pneg %p20
    %p27 = scmp.eq.s32.totalorder %s11, 1
    %p28 = por %p26, %p27
    %p29 = scmp.ne.s32.totalorder %s21, %s24
    %p30 = scmp.eq.s32.totalorder %s11, 0
    %p31 = por %p29, %p30
    %p32 = scmp.ne.s32.totalorder %s21, %s24
    %p33 = scmp.eq.s32.totalorder %s16, 1
    %p34 = por %p32, %p33
    %p35 = scmp.ne.s32.totalorder %s24, %s25
    %p36 = scmp.eq.s32.totalorder %s16, 0
    %p37 = por %p35, %p36
    %p38 = scmp.ne.s32.totalorder %s24, %s25
    %p39 = scmp.eq.s32.totalorder %s17, 1
    %p40 = por %p38, %p39
    %p42 = scmp.ne.s32.totalorder %s25, %s41
    %p43 = scmp.eq.s32.totalorder %s17, 0
    %p44 = por %p42, %p43
    %s46 = sadd.s32 %s45, 1
    %p49 = scmp.eq.s32.totalorder %s11, 1
    %p50 = scmp.ne.s32.totalorder %s45, %s47
    %p51 = scmp.eq.s32.totalorder %s11, 0
    %p52 = por %p50, %p51
    %p53 = scmp.ne.s32.totalorder %s45, %s47
    %p54 = scmp.eq.s32.totalorder %s16, 1
    %p55 = por %p53, %p54
    %p56 = scmp.ne.s32.totalorder %s47, %s48
    %p57 = scmp.eq.s32.totalorder %s16, 0
    %p58 = por %p56, %p57
    %p59 = scmp.ne.s32.totalorder %s47, %s48
    %p60 = scmp.eq.s32.totalorder %s17, 1
    %p61 = por %p59, %p60
    %p63 = scmp.ne.s32.totalorder %s48, %s62
    %p64 = scmp.eq.s32.totalorder %s17, 0
    %p65 = por %p63, %p64
    %s67 = sadd.s32 %s66, 1
    %p70 = scmp.eq.s32.totalorder %s11, 1
    %p71 = scmp.ne.s32.totalorder %s66, %s68
    %p72 = scmp.eq.s32.totalorder %s11, 0
    %p73 = por %p71, %p72
    %p74 = scmp.ne.s32.totalorder %s66, %s68
    %p75 = scmp.eq.s32.totalorder %s16, 1
    %p76 = por %p74, %p75
    %p77 = scmp.ne.s32.totalorder %s68, %s69
    %p78 = scmp.eq.s32.totalorder %s16, 0
    %p79 = por %p77, %p78
    %p80 = scmp.ne.s32.totalorder %s68, %s69
    %p81 = scmp.eq.s32.totalorder %s17, 1
    %p82 = por %p80, %p81
    %p84 = scmp.ne.s32.totalorder %s69, %s83
    %p85 = scmp.eq.s32.totalorder %s17, 0
    %p86 = por %p84, %p85
    %s88 = sadd.s32 %s87, 1
    %p91 = scmp.eq.s32.totalorder %s11, 1
    %p92 = scmp.ne.s32.totalorder %s87, %s89
    %p93 = scmp.eq.s32.totalorder %s11, 0
    %p94 = por %p92, %p93
    %p95 = scmp.ne.s32.totalorder %s87, %s89
    %p96 = scmp.eq.s32.totalorder %s16, 1
    %p97 = por %p95, %p96
    %p98 = scmp.ne.s32.totalorder %s89, %s90
    %p99 = scmp.eq.s32.totalorder %s16, 0
    %p100 = por %p98, %p99
    %p101 = scmp.ne.s32.totalorder %s89, %s90
    %p102 = scmp.eq.s32.totalorder %s17, 1
    %p103 = por %p101, %p102
    %p105 = scmp.ne.s32.totalorder %s90, %s104
    %p106 = scmp.eq.s32.totalorder %s17, 0
    %p107 = por %p105, %p106
    %s109 = sadd.s32 %s108, 1
    %p112 = scmp.eq.s32.totalorder %s11, 1
    %p113 = scmp.ne.s32.totalorder %s108, %s110
    %p114 = scmp.eq.s32.totalorder %s11, 0
    %p115 = por %p113, %p114
    %p116 = scmp.ne.s32.totalorder %s108, %s110
    %p117 = scmp.eq.s32.totalorder %s16, 1
    %p118 = por %p116, %p117
    %p119 = scmp.ne.s32.totalorder %s110, %s111
    %p120 = scmp.eq.s32.totalorder %s16, 0
    %p121 = por %p119, %p120
    %p122 = scmp.ne.s32.totalorder %s110, %s111
    %p123 = scmp.eq.s32.totalorder %s17, 1
    %p124 = por %p122, %p123
    %p126 = scmp.ne.s32.totalorder %s111, %s125
    %p127 = scmp.eq.s32.totalorder %s17, 0
    %p128 = por %p126, %p127
    %s129 = ssub.s32 %s11, %s18
    %p130 = scmp.eq.s32.totalorder %s129, 0
    %s132 = sadd.s32 %s131, 1
    %s133 = scalar_select %p130, %s131, %s132
    %p136 = pneg %p130
    %p137 = scmp.eq.s32.totalorder %s11, 1
    %p138 = por %p136, %p137
    %p139 = scmp.ne.s32.totalorder %s131, %s134
    %p140 = scmp.eq.s32.totalorder %s11, 0
    %p141 = por %p139, %p140
    %p142 = scmp.ne.s32.totalorder %s131, %s134
    %p143 = scmp.eq.s32.totalorder %s16, 1
    %p144 = por %p142, %p143
    %p145 = scmp.ne.s32.totalorder %s134, %s135
    %p146 = scmp.eq.s32.totalorder %s16, 0
    %p147 = por %p145, %p146
    %p148 = scmp.ne.s32.totalorder %s134, %s135
    %p149 = scmp.eq.s32.totalorder %s17, 1
    %p150 = por %p148, %p149
    %p152 = scmp.ne.s32.totalorder %s135, %s151
    %p153 = scmp.eq.s32.totalorder %s17, 0
    %p154 = por %p152, %p153
    %p155 = scmp.le.s32.totalorder 1, %s11
    %p156 = scmp.lt.s32.totalorder %s11, 3
    %p157 = pnand %p155, %p156
    %p158 = pneg %p157
    // Predicated region
    $region9: #{res_block.1} parent=5 // pred_check
      _
    $region10: #{res_block.1} parent=5 // pred_check_branch
      %160 = sbr.rel (%p157) target = $region12
    $region11: #{res_block.1} parent=5 // pred_region
      %s161 = ssub.s32 %s11, 1
      // Predicated region
      $region13: #{res_block.1} parent=11 // pred_check
        %p162 = pneg %p58
      $region14: #{res_block.1} parent=11 // pred_check_branch
        %164 = sbr.rel (%p162) target = $region16
      $region15: #{res_block.1} parent=11 // pred_region
        _
      $region16: #{res_block.1} parent=11 // pred_fallthru
        _
      // Predicated region
      $region17: #{res_block.1} parent=11 // pred_check
        %p165 = pneg %p79
      $region18: #{res_block.1} parent=11 // pred_check_branch
        %167 = sbr.rel (%p165) target = $region20
      $region19: #{res_block.1} parent=11 // pred_region
        _
      $region20: #{res_block.1} parent=11 // pred_fallthru
        _
      // Predicated region
      $region21: #{res_block.1} parent=11 // pred_check
        %p168 = pneg %p100
      $region22: #{res_block.1} parent=11 // pred_check_branch
        %170 = sbr.rel (%p168) target = $region24
      $region23: #{res_block.1} parent=11 // pred_region
        _
      $region24: #{res_block.1} parent=11 // pred_fallthru
        _
      // Predicated region
      $region25: #{res_block.1} parent=11 // pred_check
        %p171 = pneg %p121
      $region26: #{res_block.1} parent=11 // pred_check_branch
        %173 = sbr.rel (%p171) target = $region28
      $region27: #{res_block.1} parent=11 // pred_region
        _
      $region28: #{res_block.1} parent=11 // pred_fallthru
        _
    $region12: #{res_block.1} parent=5 // pred_fallthru
      _
    %p174 = scmp.lt.s32.totalorder %s11, 2
    // Predicated region
    $region29: #{res_block.1} parent=5 // pred_check
      %p175 = pneg %p174
    $region30: #{res_block.1} parent=5 // pred_check_branch
      %177 = sbr.rel (%p175) target = $region32
    $region31: #{res_block.1} parent=5 // pred_region
      // Predicated region
      $region33: #{res_block.1} parent=31 // pred_check
        %p178 = pneg %p31
      $region34: #{res_block.1} parent=31 // pred_check_branch
        %180 = sbr.rel (%p178) target = $region36
      $region35: #{res_block.1} parent=31 // pred_region
        %p181 = scmp.lt.s32.totalorder %s11, 1
        %s182 = scalar_select %p181, %s11, 1
        %s183 = smul.addr %s182, 8
        %s184 = smul.addr %s183, 8
        %s185 = scalar_lea.vmem %s0, %s184
      $region36: #{res_block.1} parent=31 // pred_fallthru
        _
    $region32: #{res_block.1} parent=5 // pred_fallthru
      _
    %p186 = scmp.le.s32.totalorder 1, %s11
    %p187 = scmp.lt.s32.totalorder %s11, 3
    %p188 = pnand %p186, %p187
    %p189 = pneg %p188
    // Predicated region
    $region37: #{res_block.1} parent=5 // pred_check
      _
    $region38: #{res_block.1} parent=5 // pred_check_branch
      %191 = sbr.rel (%p188) target = $region40
    $region39: #{res_block.1} parent=5 // pred_region
      %s192 = ssub.s32 %s11, 1
      %p193 = scmp.lt.s32.totalorder %s16, 1
      %s194 = scalar_select %p193, %s16, 1
      %s195 = smul.addr %s194, 8
      %s196 = smul.addr %s195, 8
      %s197 = scalar_lea.vmem %s0, %s196
      %p198 = pneg %p37
      %p199 = pneg %p34
      %p200 = pneg %p58
      %p201 = pneg %p55
      %p202 = pneg %p79
      %p203 = pneg %p76
      %p204 = pneg %p100
      %p205 = pneg %p97
      %p206 = pneg %p121
      %p207 = pneg %p118
      %p208 = pneg %p147
      %p209 = pneg %p144
      %p210 = scmp.lt.s32.totalorder %s16, 1
      %s211 = scalar_select %p210, %s16, 1
      %s212 = smul.addr %s211, 8
      %s213 = smul.addr %s212, 8
      %s214 = scalar_lea.vmem %s5, %s213
      %p215 = scmp.lt.s32.totalorder %s16, 1
      %s216 = scalar_select %p215, %s16, 1
      %s217 = smul.addr %s216, 8
      %s218 = smul.addr %s217, 8
      %s219 = scalar_lea.vmem %s0, %s218
      %p220 = scmp.lt.s32.totalorder %s16, 1
      %s221 = scalar_select %p220, %s16, 1
      %s222 = smul.addr %s221, 8
      %s223 = smul.addr %s222, 8
      %s224 = scalar_lea.vmem %s5, %s223
      %v226 = vlaneseq
      %v227 = vand.u32 %v226, 127
      %v228 = vadd.s32 %v227, 128
      %vm229 = vcmp.lt.s32.totalorder %v227, 0
      %v230 = vsub.s32 0, %v227
      %v231 = vsel %vm229, %v230, %v227
      %v232 = vshrl.u32 %v231, 4
      %v233 = vand.u32 %v231, 15
      %v234 = vsub.s32 0, %v233
      %v235 = vsel %vm229, %v234, %v233
      %vm236 = vcmp.lt.s32.totalorder %v228, 0
      %v237 = vsub.s32 0, %v228
      %v238 = vsel %vm236, %v237, %v228
      %v239 = vshrl.u32 %v238, 4
      %v240 = vand.u32 %v238, 15
      %v241 = vsub.s32 0, %v240
      %v242 = vsel %vm236, %v241, %v240
      %vm243 = vcmp.ne.s32.totalorder %v235, 0
      %vm244 = vcmp.ne.s32.totalorder %v242, 0
      %vm245 = vcmp.lt.s32.totalorder %v235, 0
      %vm246 = vcmp.lt.s32.totalorder %v242, 0
      %vm247 = vmand %vm245, %vm243
      %vm248 = vmand %vm246, %vm244
      %v249 = vadd.s32 %v235, 16
      %v250 = vadd.s32 %v242, 16
      %v251 = vsel %vm247, %v249, %v235
      %v252 = vsel %vm248, %v250, %v242
      %vm253 = vcmp.ne.s32.totalorder %v251, 0
      %vm254 = vcmp.ne.s32.totalorder %v252, 0
      %v255 = vsel %vm253, 1, 0
      %v256 = vsel %vm254, 1, 0
      %v257 = vcvt.s32.f32 %v255
      %v258 = vcvt.s32.f32 %v256
      %vm259 = vcmp.ne.s32.totalorder %v251, 15
      %vm260 = vcmp.ne.s32.totalorder %v252, 15
      %v261 = vsel %vm259, 1, 0
      %v262 = vsel %vm260, 1, 0
      %v263 = vcvt.s32.f32 %v261
      %v264 = vcvt.s32.f32 %v262
      %v265 = vld [vmem:[%s219] sm:$0xff]
      %v266 = vld [vmem:[%s219 + $0x8] sm:$0xff]
      %v267 = vld [vmem:[%s219 + $0x10] sm:$0xff]
      %v268 = vld [vmem:[%s219 + $0x18] sm:$0xff]
      %v269 = vld [vmem:[%s219 + $0x20] sm:$0xff]
      %v270 = vld [vmem:[%s219 + $0x28] sm:$0xff]
      %v271 = vld [vmem:[%s219 + $0x30] sm:$0xff]
      %v272 = vld [vmem:[%s219 + $0x38] sm:$0xff]
      %281 = vrot.lane.b32.xlu0 %v265, 17
      %v282 = vpop.permute.xlu0 %281
      %283 = vrot.lane.b32.xlu0 %v266, 17
      %v284 = vpop.permute.xlu0 %283
      %285 = vrot.lane.b32.xlu0 %v267, 17
      %v286 = vpop.permute.xlu0 %285
      %287 = vrot.lane.b32.xlu0 %v268, 17
      %v288 = vpop.permute.xlu0 %287
      %289 = vrot.lane.b32.xlu0 %v269, 17
      %v290 = vpop.permute.xlu0 %289
      %291 = vrot.lane.b32.xlu0 %v270, 17
      %v292 = vpop.permute.xlu0 %291
      %293 = vrot.lane.b32.xlu0 %v271, 17
      %v294 = vpop.permute.xlu0 %293
      %295 = vrot.lane.b32.xlu0 %v272, 17
      %v296 = vpop.permute.xlu0 %295
      %vm297 = vcmask 138240
      %v298 = vsel %vm297, %v282, %v284
      %v299 = vsel %vm297, %v286, %v288
      %v300 = vsel %vm297, %v290, %v292
      %v301 = vsel %vm297, %v294, %v296
      %v314 = vsel %vm297, 0.0, %v282
      %v315 = vsel %vm297, 0.0, %v286
      %v316 = vsel %vm297, 0.0, %v290
      %v317 = vsel %vm297, 0.0, %v294
      %v318 = vsel %vm297, %v284, 0.0
      %v319 = vsel %vm297, %v288, 0.0
      %v320 = vsel %vm297, %v292, 0.0
      %v321 = vsel %vm297, %v296, 0.0
      %v322 = vmul.f32 %v314, %v257
      %v323 = vmul.f32 %v298, %v258
      %v324 = vmul.f32 %v315, %v257
      %v325 = vmul.f32 %v299, %v258
      %v326 = vmul.f32 %v316, %v257
      %v327 = vmul.f32 %v300, %v258
      %v328 = vmul.f32 %v317, %v257
      %v329 = vmul.f32 %v301, %v258
      %332 = vrot.lane.b32.xlu0 %v263, 2
      %v333 = vpop.permute.xlu0 %332
      %334 = vrot.lane.b32.xlu0 %v264, 2
      %v335 = vpop.permute.xlu0 %334
      %vm336 = vcmask 15360
      %v337 = vsel %vm336, %v333, %v335
      %v341 = vmul.f32 %v314, %v333
      %v342 = vmul.f32 %v298, %v337
      %v343 = vmul.f32 %v318, %v335
      %v344 = vmul.f32 %v315, %v333
      %v345 = vmul.f32 %v299, %v337
      %v346 = vmul.f32 %v319, %v335
      %v347 = vmul.f32 %v316, %v333
      %v348 = vmul.f32 %v300, %v337
      %v349 = vmul.f32 %v320, %v335
      %v350 = vmul.f32 %v317, %v333
      %v351 = vmul.f32 %v301, %v337
      %v352 = vmul.f32 %v321, %v335
      %355 = vrot.lane.b32.xlu0 %v257, 16
      %v356 = vpop.permute.xlu0 %355
      %357 = vrot.lane.b32.xlu0 %v258, 16
      %v358 = vpop.permute.xlu0 %357
      %vm359 = vcmask 130048
      %v360 = vsel %vm359, %v356, %v358
      %v364 = vmul.f32 %v314, %v356
      %v365 = vmul.f32 %v298, %v360
      %v366 = vmul.f32 %v318, %v358
      %v367 = vmul.f32 %v315, %v356
      %v368 = vmul.f32 %v299, %v360
      %v369 = vmul.f32 %v319, %v358
      %v370 = vmul.f32 %v316, %v356
      %v371 = vmul.f32 %v300, %v360
      %v372 = vmul.f32 %v320, %v358
      %v373 = vmul.f32 %v317, %v356
      %v374 = vmul.f32 %v301, %v360
      %v375 = vmul.f32 %v321, %v358
      %376 = vrot.lane.b32.xlu0 %v263, 18
      %v377 = vpop.permute.xlu0 %376
      %378 = vrot.lane.b32.xlu0 %v264, 18
      %v379 = vpop.permute.xlu0 %378
      %vm380 = vcmask 146432
      %v381 = vsel %vm380, %v377, %v379
      %v385 = vmul.f32 %v314, %v377
      %v386 = vmul.f32 %v298, %v381
      %v387 = vmul.f32 %v318, %v379
      %v388 = vmul.f32 %v315, %v377
      %v389 = vmul.f32 %v299, %v381
      %v390 = vmul.f32 %v319, %v379
      %v391 = vmul.f32 %v316, %v377
      %v392 = vmul.f32 %v300, %v381
      %v393 = vmul.f32 %v320, %v379
      %v394 = vmul.f32 %v317, %v377
      %v395 = vmul.f32 %v301, %v381
      %v396 = vmul.f32 %v321, %v379
      %397 = vrot.lane.b32.xlu0 %v257, 32
      %v398 = vpop.permute.xlu0 %397
      %399 = vrot.lane.b32.xlu0 %v258, 32
      %v400 = vpop.permute.xlu0 %399
      %vm401 = vcmask 261120
      %v402 = vsel %vm401, %v398, %v400
      %v406 = vmul.f32 %v314, %v398
      %v407 = vmul.f32 %v298, %v402
      %v408 = vmul.f32 %v318, %v400
      %v409 = vmul.f32 %v315, %v398
      %v410 = vmul.f32 %v299, %v402
      %v411 = vmul.f32 %v319, %v400
      %v412 = vmul.f32 %v316, %v398
      %v413 = vmul.f32 %v300, %v402
      %v414 = vmul.f32 %v320, %v400
      %v415 = vmul.f32 %v317, %v398
      %v416 = vmul.f32 %v301, %v402
      %v417 = vmul.f32 %v321, %v400
      %418 = vrot.lane.b32.xlu0 %v263, 34
      %v419 = vpop.permute.xlu0 %418
      %420 = vrot.lane.b32.xlu0 %v264, 34
      %v421 = vpop.permute.xlu0 %420
      %vm422 = vcmask 277504
      %v423 = vsel %vm422, %v419, %v421
      %v427 = vmul.f32 %v314, %v419
      %v428 = vmul.f32 %v298, %v423
      %v429 = vmul.f32 %v318, %v421
      %v430 = vmul.f32 %v315, %v419
      %v431 = vmul.f32 %v299, %v423
      %v432 = vmul.f32 %v319, %v421
      %v433 = vmul.f32 %v316, %v419
      %v434 = vmul.f32 %v300, %v423
      %v435 = vmul.f32 %v320, %v421
      %v436 = vmul.f32 %v317, %v419
      %v437 = vmul.f32 %v301, %v423
      %v438 = vmul.f32 %v321, %v421
      %447 = vrot.lane.b32.xlu0 %v314, 127
      %v448 = vpop.permute.xlu0 %447
      %449 = vrot.lane.b32.xlu0 %v298, 127
      %v450 = vpop.permute.xlu0 %449
      %451 = vrot.lane.b32.xlu0 %v318, 127
      %v452 = vpop.permute.xlu0 %451
      %453 = vrot.lane.b32.xlu0 %v315, 127
      %v454 = vpop.permute.xlu0 %453
      %455 = vrot.lane.b32.xlu0 %v299, 127
      %v456 = vpop.permute.xlu0 %455
      %457 = vrot.lane.b32.xlu0 %v319, 127
      %v458 = vpop.permute.xlu0 %457
      %459 = vrot.lane.b32.xlu0 %v316, 127
      %v460 = vpop.permute.xlu0 %459
      %461 = vrot.lane.b32.xlu0 %v300, 127
      %v462 = vpop.permute.xlu0 %461
      %463 = vrot.lane.b32.xlu0 %v320, 127
      %v464 = vpop.permute.xlu0 %463
      %465 = vrot.lane.b32.xlu0 %v317, 127
      %v466 = vpop.permute.xlu0 %465
      %467 = vrot.lane.b32.xlu0 %v301, 127
      %v468 = vpop.permute.xlu0 %467
      %469 = vrot.lane.b32.xlu0 %v321, 127
      %v470 = vpop.permute.xlu0 %469
      %vm471 = vcmask 1039360
      %v472 = vsel %vm471, %v448, %v450
      %v473 = vsel %vm471, %v450, %v452
      %v474 = vsel %vm471, %v454, %v456
      %v475 = vsel %vm471, %v456, %v458
      %v476 = vsel %vm471, %v460, %v462
      %v477 = vsel %vm471, %v462, %v464
      %v478 = vsel %vm471, %v466, %v468
      %v479 = vsel %vm471, %v468, %v470
      %500 = vrot.lane.b32.xlu0 %v341, 126
      %v501 = vpop.permute.xlu0 %500
      %502 = vrot.lane.b32.xlu0 %v342, 126
      %v503 = vpop.permute.xlu0 %502
      %504 = vrot.lane.b32.xlu0 %v343, 126
      %v505 = vpop.permute.xlu0 %504
      %506 = vrot.lane.b32.xlu0 %v344, 126
      %v507 = vpop.permute.xlu0 %506
      %508 = vrot.lane.b32.xlu0 %v345, 126
      %v509 = vpop.permute.xlu0 %508
      %510 = vrot.lane.b32.xlu0 %v346, 126
      %v511 = vpop.permute.xlu0 %510
      %512 = vrot.lane.b32.xlu0 %v347, 126
      %v513 = vpop.permute.xlu0 %512
      %514 = vrot.lane.b32.xlu0 %v348, 126
      %v515 = vpop.permute.xlu0 %514
      %516 = vrot.lane.b32.xlu0 %v349, 126
      %v517 = vpop.permute.xlu0 %516
      %518 = vrot.lane.b32.xlu0 %v350, 126
      %v519 = vpop.permute.xlu0 %518
      %520 = vrot.lane.b32.xlu0 %v351, 126
      %v521 = vpop.permute.xlu0 %520
      %522 = vrot.lane.b32.xlu0 %v352, 126
      %v523 = vpop.permute.xlu0 %522
      %vm524 = vcmask 1031168
      %v525 = vsel %vm524, %v501, %v503
      %v526 = vsel %vm524, %v503, %v505
      %v527 = vsel %vm524, %v507, %v509
      %v528 = vsel %vm524, %v509, %v511
      %v529 = vsel %vm524, %v513, %v515
      %v530 = vsel %vm524, %v515, %v517
      %v531 = vsel %vm524, %v519, %v521
      %v532 = vsel %vm524, %v521, %v523
      %553 = vrot.lane.b32.xlu0 %v364, 112
      %v554 = vpop.permute.xlu0 %553
      %555 = vrot.lane.b32.xlu0 %v365, 112
      %v556 = vpop.permute.xlu0 %555
      %557 = vrot.lane.b32.xlu0 %v366, 112
      %v558 = vpop.permute.xlu0 %557
      %559 = vrot.lane.b32.xlu0 %v367, 112
      %v560 = vpop.permute.xlu0 %559
      %561 = vrot.lane.b32.xlu0 %v368, 112
      %v562 = vpop.permute.xlu0 %561
      %563 = vrot.lane.b32.xlu0 %v369, 112
      %v564 = vpop.permute.xlu0 %563
      %565 = vrot.lane.b32.xlu0 %v370, 112
      %v566 = vpop.permute.xlu0 %565
      %567 = vrot.lane.b32.xlu0 %v371, 112
      %v568 = vpop.permute.xlu0 %567
      %569 = vrot.lane.b32.xlu0 %v372, 112
      %v570 = vpop.permute.xlu0 %569
      %571 = vrot.lane.b32.xlu0 %v373, 112
      %v572 = vpop.permute.xlu0 %571
      %573 = vrot.lane.b32.xlu0 %v374, 112
      %v574 = vpop.permute.xlu0 %573
      %575 = vrot.lane.b32.xlu0 %v375, 112
      %v576 = vpop.permute.xlu0 %575
      %vm577 = vcmask 916480
      %v578 = vsel %vm577, %v554, %v556
      %v579 = vsel %vm577, %v556, %v558
      %v580 = vsel %vm577, %v560, %v562
      %v581 = vsel %vm577, %v562, %v564
      %v582 = vsel %vm577, %v566, %v568
      %v583 = vsel %vm577, %v568, %v570
      %v584 = vsel %vm577, %v572, %v574
      %v585 = vsel %vm577, %v574, %v576
      %594 = vrot.lane.b32.xlu0 %v314, 111
      %v595 = vpop.permute.xlu0 %594
      %596 = vrot.lane.b32.xlu0 %v298, 111
      %v597 = vpop.permute.xlu0 %596
      %598 = vrot.lane.b32.xlu0 %v318, 111
      %v599 = vpop.permute.xlu0 %598
      %600 = vrot.lane.b32.xlu0 %v315, 111
      %v601 = vpop.permute.xlu0 %600
      %602 = vrot.lane.b32.xlu0 %v299, 111
      %v603 = vpop.permute.xlu0 %602
      %604 = vrot.lane.b32.xlu0 %v319, 111
      %v605 = vpop.permute.xlu0 %604
      %606 = vrot.lane.b32.xlu0 %v316, 111
      %v607 = vpop.permute.xlu0 %606
      %608 = vrot.lane.b32.xlu0 %v300, 111
      %v609 = vpop.permute.xlu0 %608
      %610 = vrot.lane.b32.xlu0 %v320, 111
      %v611 = vpop.permute.xlu0 %610
      %612 = vrot.lane.b32.xlu0 %v317, 111
      %v613 = vpop.permute.xlu0 %612
      %614 = vrot.lane.b32.xlu0 %v301, 111
      %v615 = vpop.permute.xlu0 %614
      %616 = vrot.lane.b32.xlu0 %v321, 111
      %v617 = vpop.permute.xlu0 %616
      %vm618 = vcmask 908288
      %v619 = vsel %vm618, %v595, %v597
      %v620 = vsel %vm618, %v597, %v599
      %v621 = vsel %vm618, %v601, %v603
      %v622 = vsel %vm618, %v603, %v605
      %v623 = vsel %vm618, %v607, %v609
      %v624 = vsel %vm618, %v609, %v611
      %v625 = vsel %vm618, %v613, %v615
      %v626 = vsel %vm618, %v615, %v617
      %647 = vrot.lane.b32.xlu0 %v385, 110
      %v648 = vpop.permute.xlu0 %647
      %649 = vrot.lane.b32.xlu0 %v386, 110
      %v650 = vpop.permute.xlu0 %649
      %651 = vrot.lane.b32.xlu0 %v387, 110
      %v652 = vpop.permute.xlu0 %651
      %653 = vrot.lane.b32.xlu0 %v388, 110
      %v654 = vpop.permute.xlu0 %653
      %655 = vrot.lane.b32.xlu0 %v389, 110
      %v656 = vpop.permute.xlu0 %655
      %657 = vrot.lane.b32.xlu0 %v390, 110
      %v658 = vpop.permute.xlu0 %657
      %659 = vrot.lane.b32.xlu0 %v391, 110
      %v660 = vpop.permute.xlu0 %659
      %661 = vrot.lane.b32.xlu0 %v392, 110
      %v662 = vpop.permute.xlu0 %661
      %663 = vrot.lane.b32.xlu0 %v393, 110
      %v664 = vpop.permute.xlu0 %663
      %665 = vrot.lane.b32.xlu0 %v394, 110
      %v666 = vpop.permute.xlu0 %665
      %667 = vrot.lane.b32.xlu0 %v395, 110
      %v668 = vpop.permute.xlu0 %667
      %669 = vrot.lane.b32.xlu0 %v396, 110
      %v670 = vpop.permute.xlu0 %669
      %vm671 = vcmask 900096
      %v672 = vsel %vm671, %v648, %v650
      %v673 = vsel %vm671, %v650, %v652
      %v674 = vsel %vm671, %v654, %v656
      %v675 = vsel %vm671, %v656, %v658
      %v676 = vsel %vm671, %v660, %v662
      %v677 = vsel %vm671, %v662, %v664
      %v678 = vsel %vm671, %v666, %v668
      %v679 = vsel %vm671, %v668, %v670
      %700 = vrot.lane.b32.xlu0 %v406, 96
      %v701 = vpop.permute.xlu0 %700
      %702 = vrot.lane.b32.xlu0 %v407, 96
      %v703 = vpop.permute.xlu0 %702
      %704 = vrot.lane.b32.xlu0 %v408, 96
      %v705 = vpop.permute.xlu0 %704
      %706 = vrot.lane.b32.xlu0 %v409, 96
      %v707 = vpop.permute.xlu0 %706
      %708 = vrot.lane.b32.xlu0 %v410, 96
      %v709 = vpop.permute.xlu0 %708
      %710 = vrot.lane.b32.xlu0 %v411, 96
      %v711 = vpop.permute.xlu0 %710
      %712 = vrot.lane.b32.xlu0 %v412, 96
      %v713 = vpop.permute.xlu0 %712
      %714 = vrot.lane.b32.xlu0 %v413, 96
      %v715 = vpop.permute.xlu0 %714
      %716 = vrot.lane.b32.xlu0 %v414, 96
      %v717 = vpop.permute.xlu0 %716
      %718 = vrot.lane.b32.xlu0 %v415, 96
      %v719 = vpop.permute.xlu0 %718
      %720 = vrot.lane.b32.xlu0 %v416, 96
      %v721 = vpop.permute.xlu0 %720
      %722 = vrot.lane.b32.xlu0 %v417, 96
      %v723 = vpop.permute.xlu0 %722
      %vm724 = vcmask 785408
      %v725 = vsel %vm724, %v701, %v703
      %v726 = vsel %vm724, %v703, %v705
      %v727 = vsel %vm724, %v707, %v709
      %v728 = vsel %vm724, %v709, %v711
      %v729 = vsel %vm724, %v713, %v715
      %v730 = vsel %vm724, %v715, %v717
      %v731 = vsel %vm724, %v719, %v721
      %v732 = vsel %vm724, %v721, %v723
      %741 = vrot.lane.b32.xlu0 %v314, 95
      %v742 = vpop.permute.xlu0 %741
      %743 = vrot.lane.b32.xlu0 %v298, 95
      %v744 = vpop.permute.xlu0 %743
      %745 = vrot.lane.b32.xlu0 %v318, 95
      %v746 = vpop.permute.xlu0 %745
      %747 = vrot.lane.b32.xlu0 %v315, 95
      %v748 = vpop.permute.xlu0 %747
      %749 = vrot.lane.b32.xlu0 %v299, 95
      %v750 = vpop.permute.xlu0 %749
      %751 = vrot.lane.b32.xlu0 %v319, 95
      %v752 = vpop.permute.xlu0 %751
      %753 = vrot.lane.b32.xlu0 %v316, 95
      %v754 = vpop.permute.xlu0 %753
      %755 = vrot.lane.b32.xlu0 %v300, 95
      %v756 = vpop.permute.xlu0 %755
      %757 = vrot.lane.b32.xlu0 %v320, 95
      %v758 = vpop.permute.xlu0 %757
      %759 = vrot.lane.b32.xlu0 %v317, 95
      %v760 = vpop.permute.xlu0 %759
      %761 = vrot.lane.b32.xlu0 %v301, 95
      %v762 = vpop.permute.xlu0 %761
      %763 = vrot.lane.b32.xlu0 %v321, 95
      %v764 = vpop.permute.xlu0 %763
      %vm765 = vcmask 777216
      %v766 = vsel %vm765, %v742, %v744
      %v767 = vsel %vm765, %v744, %v746
      %v768 = vsel %vm765, %v748, %v750
      %v769 = vsel %vm765, %v750, %v752
      %v770 = vsel %vm765, %v754, %v756
      %v771 = vsel %vm765, %v756, %v758
      %v772 = vsel %vm765, %v760, %v762
      %v773 = vsel %vm765, %v762, %v764
      %794 = vrot.lane.b32.xlu0 %v427, 94
      %v795 = vpop.permute.xlu0 %794
      %796 = vrot.lane.b32.xlu0 %v428, 94
      %v797 = vpop.permute.xlu0 %796
      %798 = vrot.lane.b32.xlu0 %v429, 94
      %v799 = vpop.permute.xlu0 %798
      %800 = vrot.lane.b32.xlu0 %v430, 94
      %v801 = vpop.permute.xlu0 %800
      %802 = vrot.lane.b32.xlu0 %v431, 94
      %v803 = vpop.permute.xlu0 %802
      %804 = vrot.lane.b32.xlu0 %v432, 94
      %v805 = vpop.permute.xlu0 %804
      %806 = vrot.lane.b32.xlu0 %v433, 94
      %v807 = vpop.permute.xlu0 %806
      %808 = vrot.lane.b32.xlu0 %v434, 94
      %v809 = vpop.permute.xlu0 %808
      %810 = vrot.lane.b32.xlu0 %v435, 94
      %v811 = vpop.permute.xlu0 %810
      %812 = vrot.lane.b32.xlu0 %v436, 94
      %v813 = vpop.permute.xlu0 %812
      %814 = vrot.lane.b32.xlu0 %v437, 94
      %v815 = vpop.permute.xlu0 %814
      %816 = vrot.lane.b32.xlu0 %v438, 94
      %v817 = vpop.permute.xlu0 %816
      %vm818 = vcmask 769024
      %v819 = vsel %vm818, %v795, %v797
      %v820 = vsel %vm818, %v797, %v799
      %v821 = vsel %vm818, %v801, %v803
      %v822 = vsel %vm818, %v803, %v805
      %v823 = vsel %vm818, %v807, %v809
      %v824 = vsel %vm818, %v809, %v811
      %v825 = vsel %vm818, %v813, %v815
      %v826 = vsel %vm818, %v815, %v817
      %v835 = vpack.c.bf16 %v324, %v322
      %v836 = vpack.c.bf16 %v325, %v323
      %v837 = vpack.c.bf16 %v328, %v326
      %v838 = vpack.c.bf16 %v329, %v327
      %v839 = vpack.c.bf16 %v474, %v472
      %v840 = vpack.c.bf16 %v475, %v473
      %v841 = vpack.c.bf16 %v478, %v476
      %v842 = vpack.c.bf16 %v479, %v477
      %v843 = vpack.c.bf16 %v527, %v525
      %v844 = vpack.c.bf16 %v528, %v526
      %v845 = vpack.c.bf16 %v531, %v529
      %v846 = vpack.c.bf16 %v532, %v530
      %v847 = vpack.c.bf16 %v580, %v578
      %v848 = vpack.c.bf16 %v581, %v579
      %v849 = vpack.c.bf16 %v584, %v582
      %v850 = vpack.c.bf16 %v585, %v583
      %v851 = vpack.c.bf16 %v621, %v619
      %v852 = vpack.c.bf16 %v622, %v620
      %v853 = vpack.c.bf16 %v625, %v623
      %v854 = vpack.c.bf16 %v626, %v624
      %v855 = vpack.c.bf16 %v674, %v672
      %v856 = vpack.c.bf16 %v675, %v673
      %v857 = vpack.c.bf16 %v678, %v676
      %v858 = vpack.c.bf16 %v679, %v677
      %v859 = vpack.c.bf16 %v727, %v725
      %v860 = vpack.c.bf16 %v728, %v726
      %v861 = vpack.c.bf16 %v731, %v729
      %v862 = vpack.c.bf16 %v732, %v730
      %v863 = vpack.c.bf16 %v768, %v766
      %v864 = vpack.c.bf16 %v769, %v767
      %v865 = vpack.c.bf16 %v772, %v770
      %v866 = vpack.c.bf16 %v773, %v771
      %v867 = vpack.c.bf16 %v821, %v819
      %v868 = vpack.c.bf16 %v822, %v820
      %v869 = vpack.c.bf16 %v825, %v823
      %v870 = vpack.c.bf16 %v826, %v824
      %v871 = vld [vmem:[%s1] sm:$0xff]
      %v872 = vld [vmem:[%s1 + $0x8] sm:$0xf]
      %v873 = vld [vmem:[%s1 + $0xc] sm:$0xff]
      %v874 = vld [vmem:[%s1 + $0x14] sm:$0xf]
      %v875 = vld [vmem:[%s1 + $0x18] sm:$0xff]
      %v876 = vld [vmem:[%s1 + $0x20] sm:$0xf]
      %v877 = vld [vmem:[%s1 + $0x24] sm:$0xff]
      %v878 = vld [vmem:[%s1 + $0x2c] sm:$0xf]
      %v879 = vld [vmem:[%s2] sm:$0xff]
      %v880 = vld [vmem:[%s2 + $0x8] sm:$0xff]
      %v881 = vld [vmem:[%s2 + $0x10] sm:$0xff]
      %v882 = vld [vmem:[%s2 + $0x18] sm:$0xff]
      %884 = vset.pattern.permute.xlu0 0
      %885 = vperm.xlu0 %884, %v879
      %v886 = vpop.permute.xlu0 %885
      %889 = vset.pattern.permute.xlu0 0
      %890 = vperm.xlu0 %889, %v880
      %v891 = vpop.permute.xlu0 %890
      %894 = vset.pattern.permute.xlu0 0
      %895 = vperm.xlu0 %894, %v881
      %v896 = vpop.permute.xlu0 %895
      %899 = vset.pattern.permute.xlu0 0
      %900 = vperm.xlu0 %899, %v882
      %v901 = vpop.permute.xlu0 %900
      %v911 = vunpack.c.l.b16 %v871
      %v912 = vunpack.c.h.b16 %v871
      %v913 = vunpack.c.l.b16 %v872
      %v914 = vunpack.c.l.b16 %v873
      %v915 = vunpack.c.h.b16 %v873
      %v916 = vunpack.c.l.b16 %v874
      %v917 = vunpack.c.l.b16 %v875
      %v918 = vunpack.c.h.b16 %v875
      %v919 = vunpack.c.l.b16 %v876
      %v920 = vunpack.c.l.b16 %v877
      %v921 = vunpack.c.h.b16 %v877
      %v922 = vunpack.c.l.b16 %v878
      %v923 = vpack.c.b16 %v914, %v911
      %v924 = vpack.c.b16 %v915, %v912
      %v925 = vpack.c.b16 %v916, %v913
      %v926 = vpack.c.b16 %v920, %v917
      %v927 = vpack.c.b16 %v921, %v918
      %v928 = vpack.c.b16 %v922, %v919
      %v934 = vsel %vm401, %v925, 0
      %v937 = vsel %vm401, %v928, 0
      %939 = vmatprep.subr.bf16.mxu0 %v836
      %940 = vmatpush1.bf16.msra.mxu0 %v835
      %941 = vmatprep.subr.bf16.mxu0 %v838
      %942 = vmatpush1.bf16.msra.mxu0 %v837
      %943 = vmatprep.subr.bf16.mxu0 %v840
      %944 = vmatpush1.bf16.msra.mxu0 %v839
      %945 = vmatprep.subr.bf16.mxu0 %v842
      %946 = vmatpush1.bf16.msra.mxu0 %v841
      %947 = vmatprep.subr.bf16.mxu0 %v844
      %948 = vmatpush1.bf16.msra.mxu0 %v843
      %949 = vmatprep.subr.bf16.mxu0 %v846
      %950 = vmatpush1.bf16.msra.mxu0 %v845
      %951 = vmatprep.subr.bf16.mxu0 %v848
      %952 = vmatpush1.bf16.msra.mxu0 %v847
      %953 = vmatprep.subr.bf16.mxu0 %v850
      %954 = vmatpush1.bf16.msra.mxu0 %v849
      %955 = vmatprep.subr.bf16.mxu0 %v852
      %956 = vmatpush1.bf16.msra.mxu0 %v851
      %957 = vmatprep.subr.bf16.mxu0 %v854
      %958 = vmatpush1.bf16.msra.mxu0 %v853
      %959 = vmatprep.subr.bf16.mxu0 %v856
      %960 = vmatpush1.bf16.msra.mxu0 %v855
      %961 = vmatprep.subr.bf16.mxu0 %v858
      %962 = vmatpush1.bf16.msra.mxu0 %v857
      %963 = vmatprep.subr.bf16.mxu0 %v860
      %964 = vmatpush1.bf16.msra.mxu0 %v859
      %965 = vmatprep.subr.bf16.mxu0 %v862
      %966 = vmatpush1.bf16.msra.mxu0 %v861
      %967 = vmatprep.subr.bf16.mxu0 %v864
      %968 = vmatpush1.bf16.msra.mxu0 %v863
      %969 = vmatprep.subr.bf16.mxu0 %v866
      %970 = vmatpush1.bf16.msra.mxu0 %v865
      %971 = vmatprep.mubr.bf16.mxu0 %v924
      %972 = vmatmul.mubr.bf16.gmra.mrb[0].mxu0 %v923
      %v973 = vpop.f32.mrb[0].mxu0
      %v974 = vadd.f32 %v886, %v973
      %v975 = vpop.f32.mrb[0].mxu0
      %v976 = vadd.f32 %v886, %v975
      %v977 = vpop.f32.mrb[0].mxu0
      %v978 = vadd.f32 %v891, %v977
      %v979 = vpop.f32.mrb[0].mxu0
      %v980 = vadd.f32 %v891, %v979
      %981 = vmatprep.mubr.bf16.mxu0 %v927
      %982 = vmatmul.mubr.bf16.gmra.mrb[0].mxu0 %v926
      %v983 = vpop.f32.mrb[0].mxu0
      %v984 = vadd.f32 %v896, %v983
      %v985 = vpop.f32.mrb[0].mxu0
      %v986 = vadd.f32 %v896, %v985
      %v987 = vpop.f32.mrb[0].mxu0
      %v988 = vadd.f32 %v901, %v987
      %v989 = vpop.f32.mrb[0].mxu0
      %v990 = vadd.f32 %v901, %v989
      %991 = vdwg.mxu0
      %992 = vmatprep.subr.bf16.mxu0 %v868
      %993 = vmatpush1.bf16.msra.mxu0 %v867
      %994 = vmatprep.subr.bf16.mxu0 %v870
      %995 = vmatpush1.bf16.msra.mxu0 %v869
      %996 = vmatprep.subr.bf16.mxu0 0
      %997 = vmatpush1.bf16.msra.mxu0 0
      %998 = vmatprep.subr.bf16.mxu0 0
      %999 = vmatpush1.bf16.msra.mxu0 0
      %1000 = vmatprep.subr.bf16.mxu0 0
      %1001 = vmatpush1.bf16.msra.mxu0 0
      %1002 = vmatprep.subr.bf16.mxu0 0
      %1003 = vmatpush1.bf16.msra.mxu0 0
      %1004 = vmatprep.subr.bf16.mxu0 0
      %1005 = vmatpush1.bf16.msra.mxu0 0
      %1006 = vmatprep.subr.bf16.mxu0 0
      %1007 = vmatpush1.bf16.msra.mxu0 0
      %1008 = vmatprep.subr.bf16.mxu0 0
      %1009 = vmatpush1.bf16.msra.mxu0 0
      %1010 = vmatprep.subr.bf16.mxu0 0
      %1011 = vmatpush1.bf16.msra.mxu0 0
      %1012 = vmatprep.subr.bf16.mxu0 0
      %1013 = vmatpush1.bf16.msra.mxu0 0
      %1014 = vmatprep.subr.bf16.mxu0 0
      %1015 = vmatpush1.bf16.msra.mxu0 0
      %1016 = vmatprep.subr.bf16.mxu0 0
      %1017 = vmatpush1.bf16.msra.mxu0 0
      %1018 = vmatprep.subr.bf16.mxu0 0
      %1019 = vmatpush1.bf16.msra.mxu0 0
      %1020 = vmatprep.subr.bf16.mxu0 0
      %1021 = vmatpush1.bf16.msra.mxu0 0
      %1022 = vmatprep.subr.bf16.mxu0 0
      %1023 = vmatpush1.bf16.msra.mxu0 0
      %1024 = vmatprep.mubr.bf16.mxu0 0
      %1025 = vmatmul.mubr.bf16.gmra.mrb[0].mxu0 %v934
      %v1026 = vpop.f32.mrb[0].mxu0
      %v1027 = vadd.f32 %v974, %v1026
      %v1028 = vpop.f32.mrb[0].mxu0
      %v1029 = vadd.f32 %v976, %v1028
      %v1030 = vpop.f32.mrb[0].mxu0
      %v1031 = vadd.f32 %v978, %v1030
      %v1032 = vpop.f32.mrb[0].mxu0
      %v1033 = vadd.f32 %v980, %v1032
      %1034 = vmatprep.mubr.bf16.mxu0 0
      %1035 = vmatmul.mubr.bf16.gmra.mrb[0].mxu0 %v937
      %v1036 = vpop.f32.mrb[0].mxu0
      %v1037 = vadd.f32 %v984, %v1036
      %v1038 = vpop.f32.mrb[0].mxu0
      %v1039 = vadd.f32 %v986, %v1038
      %v1040 = vpop.f32.mrb[0].mxu0
      %v1041 = vadd.f32 %v988, %v1040
      %v1042 = vpop.f32.mrb[0].mxu0
      %v1043 = vadd.f32 %v990, %v1042
      %1044 = vdwg.mxu0
      %v1045 = vadd.f32 %v1027, %v1029
      %1046 = vadd.xlane.f32.xlu0 %v1045
      %v1047 = vpop.xlane.xlu0 %1046
      %v1048 = vadd.f32 %v1031, %v1033
      %1049 = vadd.xlane.f32.xlu0 %v1048
      %v1050 = vpop.xlane.xlu0 %1049
      %v1051 = vadd.f32 %v1037, %v1039
      %1052 = vadd.xlane.f32.xlu0 %v1051
      %v1053 = vpop.xlane.xlu0 %1052
      %v1054 = vadd.f32 %v1041, %v1043
      %1055 = vadd.xlane.f32.xlu0 %v1054
      %v1056 = vpop.xlane.xlu0 %1055
      %v1057 = vmul.f32 %v1047, 0.00390625
      %v1058 = vmul.f32 %v1050, 0.00390625
      %v1059 = vmul.f32 %v1053, 0.00390625
      %v1060 = vmul.f32 %v1056, 0.00390625
      %v1061 = vmul.f32 %v1027, %v1027
      %v1062 = vmul.f32 %v1029, %v1029
      %v1063 = vmul.f32 %v1031, %v1031
      %v1064 = vmul.f32 %v1033, %v1033
      %v1065 = vmul.f32 %v1037, %v1037
      %v1066 = vmul.f32 %v1039, %v1039
      %v1067 = vmul.f32 %v1041, %v1041
      %v1068 = vmul.f32 %v1043, %v1043
      %v1069 = vadd.f32 %v1061, %v1062
      %1070 = vadd.xlane.f32.xlu0 %v1069
      %v1071 = vpop.xlane.xlu0 %1070
      %v1072 = vadd.f32 %v1063, %v1064
      %1073 = vadd.xlane.f32.xlu0 %v1072
      %v1074 = vpop.xlane.xlu0 %1073
      %v1075 = vadd.f32 %v1065, %v1066
      %1076 = vadd.xlane.f32.xlu0 %v1075
      %v1077 = vpop.xlane.xlu0 %1076
      %v1078 = vadd.f32 %v1067, %v1068
      %1079 = vadd.xlane.f32.xlu0 %v1078
      %v1080 = vpop.xlane.xlu0 %1079
      %v1081 = vmul.f32 %v1071, 0.00390625
      %v1082 = vmul.f32 %v1074, 0.00390625
      %v1083 = vmul.f32 %v1077, 0.00390625
      %v1084 = vmul.f32 %v1080, 0.00390625
      %v1085 = vmul.f32 %v1057, %v1057
      %v1086 = vmul.f32 %v1058, %v1058
      %v1087 = vmul.f32 %v1059, %v1059
      %v1088 = vmul.f32 %v1060, %v1060
      %v1089 = vsub.f32 %v1081, %v1085
      %v1090 = vsub.f32 %v1082, %v1086
      %v1091 = vsub.f32 %v1083, %v1087
      %v1092 = vsub.f32 %v1084, %v1088
      %v1093 = vsub.f32 %v1027, %v1057
      %v1094 = vsub.f32 %v1029, %v1057
      %v1095 = vsub.f32 %v1031, %v1058
      %v1096 = vsub.f32 %v1033, %v1058
      %v1097 = vsub.f32 %v1037, %v1059
      %v1098 = vsub.f32 %v1039, %v1059
      %v1099 = vsub.f32 %v1041, %v1060
      %v1100 = vsub.f32 %v1043, %v1060
      %v1101 = vadd.f32 %v1089, 1e-05
      %v1102 = vadd.f32 %v1090, 1e-05
      %v1103 = vadd.f32 %v1091, 1e-05
      %v1104 = vadd.f32 %v1092, 1e-05
      %v1105 = vrsqrt.pop %v1101
      %v1106 = vrsqrt.pop %v1102
      %v1107 = vrsqrt.pop %v1103
      %v1108 = vrsqrt.pop %v1104
      %v1109 = vmul.f32 %v1093, %v1105
      %v1110 = vmul.f32 %v1094, %v1105
      %v1111 = vmul.f32 %v1095, %v1106
      %v1112 = vmul.f32 %v1096, %v1106
      %v1113 = vmul.f32 %v1097, %v1107
      %v1114 = vmul.f32 %v1098, %v1107
      %v1115 = vmul.f32 %v1099, %v1108
      %v1116 = vmul.f32 %v1100, %v1108
      %v1117 = vmax.f32 %v1109, 0.0
      %v1118 = vmax.f32 %v1110, 0.0
      %v1119 = vmax.f32 %v1111, 0.0
      %v1120 = vmax.f32 %v1112, 0.0
      %v1121 = vmax.f32 %v1113, 0.0
      %v1122 = vmax.f32 %v1114, 0.0
      %v1123 = vmax.f32 %v1115, 0.0
      %v1124 = vmax.f32 %v1116, 0.0
      %1133 = vrot.lane.b32.xlu0 %v1117, 17
      %v1134 = vpop.permute.xlu0 %1133
      %1135 = vrot.lane.b32.xlu0 %v1118, 17
      %v1136 = vpop.permute.xlu0 %1135
      %1137 = vrot.lane.b32.xlu0 %v1119, 17
      %v1138 = vpop.permute.xlu0 %1137
      %1139 = vrot.lane.b32.xlu0 %v1120, 17
      %v1140 = vpop.permute.xlu0 %1139
      %1141 = vrot.lane.b32.xlu0 %v1121, 17
      %v1142 = vpop.permute.xlu0 %1141
      %1143 = vrot.lane.b32.xlu0 %v1122, 17
      %v1144 = vpop.permute.xlu0 %1143
      %1145 = vrot.lane.b32.xlu0 %v1123, 17
      %v1146 = vpop.permute.xlu0 %1145
      %1147 = vrot.lane.b32.xlu0 %v1124, 17
      %v1148 = vpop.permute.xlu0 %1147
      %v1149 = vsel %vm297, %v1134, %v1136
      %v1150 = vsel %vm297, %v1138, %v1140
      %v1151 = vsel %vm297, %v1142, %v1144
      %v1152 = vsel %vm297, %v1146, %v1148
      %v1165 = vsel %vm297, 0.0, %v1134
      %v1166 = vsel %vm297, 0.0, %v1138
      %v1167 = vsel %vm297, 0.0, %v1142
      %v1168 = vsel %vm297, 0.0, %v1146
      %v1169 = vsel %vm297, %v1136, 0.0
      %v1170 = vsel %vm297, %v1140, 0.0
      %v1171 = vsel %vm297, %v1144, 0.0
      %v1172 = vsel %vm297, %v1148, 0.0
      %v1173 = vmul.f32 %v1165, %v257
      %v1174 = vmul.f32 %v1149, %v258
      %v1175 = vmul.f32 %v1166, %v257
      %v1176 = vmul.f32 %v1150, %v258
      %v1177 = vmul.f32 %v1167, %v257
      %v1178 = vmul.f32 %v1151, %v258
      %v1179 = vmul.f32 %v1168, %v257
      %v1180 = vmul.f32 %v1152, %v258
      %v1181 = vmul.f32 %v1165, %v333
      %v1182 = vmul.f32 %v1149, %v337
      %v1183 = vmul.f32 %v1169, %v335
      %v1184 = vmul.f32 %v1166, %v333
      %v1185 = vmul.f32 %v1150, %v337
      %v1186 = vmul.f32 %v1170, %v335
      %v1187 = vmul.f32 %v1167, %v333
      %v1188 = vmul.f32 %v1151, %v337
      %v1189 = vmul.f32 %v1171, %v335
      %v1190 = vmul.f32 %v1168, %v333
      %v1191 = vmul.f32 %v1152, %v337
      %v1192 = vmul.f32 %v1172, %v335
      %v1193 = vmul.f32 %v1165, %v356
      %v1194 = vmul.f32 %v1149, %v360
      %v1195 = vmul.f32 %v1169, %v358
      %v1196 = vmul.f32 %v1166, %v356
      %v1197 = vmul.f32 %v1150, %v360
      %v1198 = vmul.f32 %v1170, %v358
      %v1199 = vmul.f32 %v1167, %v356
      %v1200 = vmul.f32 %v1151, %v360
      %v1201 = vmul.f32 %v1171, %v358
      %v1202 = vmul.f32 %v1168, %v356
      %v1203 = vmul.f32 %v1152, %v360
      %v1204 = vmul.f32 %v1172, %v358
      %v1205 = vmul.f32 %v1165, %v377
      %v1206 = vmul.f32 %v1149, %v381
      %v1207 = vmul.f32 %v1169, %v379
      %v1208 = vmul.f32 %v1166, %v377
      %v1209 = vmul.f32 %v1150, %v381
      %v1210 = vmul.f32 %v1170, %v379
      %v1211 = vmul.f32 %v1167, %v377
      %v1212 = vmul.f32 %v1151, %v381
      %v1213 = vmul.f32 %v1171, %v379
      %v1214 = vmul.f32 %v1168, %v377
      %v1215 = vmul.f32 %v1152, %v381
      %v1216 = vmul.f32 %v1172, %v379
      %v1217 = vmul.f32 %v1165, %v398
      %v1218 = vmul.f32 %v1149, %v402
      %v1219 = vmul.f32 %v1169, %v400
      %v1220 = vmul.f32 %v1166, %v398
      %v1221 = vmul.f32 %v1150, %v402
      %v1222 = vmul.f32 %v1170, %v400
      %v1223 = vmul.f32 %v1167, %v398
      %v1224 = vmul.f32 %v1151, %v402
      %v1225 = vmul.f32 %v1171, %v400
      %v1226 = vmul.f32 %v1168, %v398
      %v1227 = vmul.f32 %v1152, %v402
      %v1228 = vmul.f32 %v1172, %v400
      %v1229 = vmul.f32 %v1165, %v419
      %v1230 = vmul.f32 %v1149, %v423
      %v1231 = vmul.f32 %v1169, %v421
      %v1232 = vmul.f32 %v1166, %v419
      %v1233 = vmul.f32 %v1150, %v423
      %v1234 = vmul.f32 %v1170, %v421
      %v1235 = vmul.f32 %v1167, %v419
      %v1236 = vmul.f32 %v1151, %v423
      %v1237 = vmul.f32 %v1171, %v421
      %v1238 = vmul.f32 %v1168, %v419
      %v1239 = vmul.f32 %v1152, %v423
      %v1240 = vmul.f32 %v1172, %v421
      %1249 = vrot.lane.b32.xlu0 %v1165, 127
      %v1250 = vpop.permute.xlu0 %1249
      %1251 = vrot.lane.b32.xlu0 %v1149, 127
      %v1252 = vpop.permute.xlu0 %1251
      %1253 = vrot.lane.b32.xlu0 %v1169, 127
      %v1254 = vpop.permute.xlu0 %1253
      %1255 = vrot.lane.b32.xlu0 %v1166, 127
      %v1256 = vpop.permute.xlu0 %1255
      %1257 = vrot.lane.b32.xlu0 %v1150, 127
      %v1258 = vpop.permute.xlu0 %1257
      %1259 = vrot.lane.b32.xlu0 %v1170, 127
      %v1260 = vpop.permute.xlu0 %1259
      %1261 = vrot.lane.b32.xlu0 %v1167, 127
      %v1262 = vpop.permute.xlu0 %1261
      %1263 = vrot.lane.b32.xlu0 %v1151, 127
      %v1264 = vpop.permute.xlu0 %1263
      %1265 = vrot.lane.b32.xlu0 %v1171, 127
      %v1266 = vpop.permute.xlu0 %1265
      %1267 = vrot.lane.b32.xlu0 %v1168, 127
      %v1268 = vpop.permute.xlu0 %1267
      %1269 = vrot.lane.b32.xlu0 %v1152, 127
      %v1270 = vpop.permute.xlu0 %1269
      %1271 = vrot.lane.b32.xlu0 %v1172, 127
      %v1272 = vpop.permute.xlu0 %1271
      %v1273 = vsel %vm471, %v1250, %v1252
      %v1274 = vsel %vm471, %v1252, %v1254
      %v1275 = vsel %vm471, %v1256, %v1258
      %v1276 = vsel %vm471, %v1258, %v1260
      %v1277 = vsel %vm471, %v1262, %v1264
      %v1278 = vsel %vm471, %v1264, %v1266
      %v1279 = vsel %vm471, %v1268, %v1270
      %v1280 = vsel %vm471, %v1270, %v1272
      %1301 = vrot.lane.b32.xlu0 %v1181, 126
      %v1302 = vpop.permute.xlu0 %1301
      %1303 = vrot.lane.b32.xlu0 %v1182, 126
      %v1304 = vpop.permute.xlu0 %1303
      %1305 = vrot.lane.b32.xlu0 %v1183, 126
      %v1306 = vpop.permute.xlu0 %1305
      %1307 = vrot.lane.b32.xlu0 %v1184, 126
      %v1308 = vpop.permute.xlu0 %1307
      %1309 = vrot.lane.b32.xlu0 %v1185, 126
      %v1310 = vpop.permute.xlu0 %1309
      %1311 = vrot.lane.b32.xlu0 %v1186, 126
      %v1312 = vpop.permute.xlu0 %1311
      %1313 = vrot.lane.b32.xlu0 %v1187, 126
      %v1314 = vpop.permute.xlu0 %1313
      %1315 = vrot.lane.b32.xlu0 %v1188, 126
      %v1316 = vpop.permute.xlu0 %1315
      %1317 = vrot.lane.b32.xlu0 %v1189, 126
      %v1318 = vpop.permute.xlu0 %1317
      %1319 = vrot.lane.b32.xlu0 %v1190, 126
      %v1320 = vpop.permute.xlu0 %1319
      %1321 = vrot.lane.b32.xlu0 %v1191, 126
      %v1322 = vpop.permute.xlu0 %1321
      %1323 = vrot.lane.b32.xlu0 %v1192, 126
      %v1324 = vpop.permute.xlu0 %1323
      %v1325 = vsel %vm524, %v1302, %v1304
      %v1326 = vsel %vm524, %v1304, %v1306
      %v1327 = vsel %vm524, %v1308, %v1310
      %v1328 = vsel %vm524, %v1310, %v1312
      %v1329 = vsel %vm524, %v1314, %v1316
      %v1330 = vsel %vm524, %v1316, %v1318
      %v1331 = vsel %vm524, %v1320, %v1322
      %v1332 = vsel %vm524, %v1322, %v1324
      %1353 = vrot.lane.b32.xlu0 %v1193, 112
      %v1354 = vpop.permute.xlu0 %1353
      %1355 = vrot.lane.b32.xlu0 %v1194, 112
      %v1356 = vpop.permute.xlu0 %1355
      %1357 = vrot.lane.b32.xlu0 %v1195, 112
      %v1358 = vpop.permute.xlu0 %1357
      %1359 = vrot.lane.b32.xlu0 %v1196, 112
      %v1360 = vpop.permute.xlu0 %1359
      %1361 = vrot.lane.b32.xlu0 %v1197, 112
      %v1362 = vpop.permute.xlu0 %1361
      %1363 = vrot.lane.b32.xlu0 %v1198, 112
      %v1364 = vpop.permute.xlu0 %1363
      %1365 = vrot.lane.b32.xlu0 %v1199, 112
      %v1366 = vpop.permute.xlu0 %1365
      %1367 = vrot.lane.b32.xlu0 %v1200, 112
      %v1368 = vpop.permute.xlu0 %1367
      %1369 = vrot.lane.b32.xlu0 %v1201, 112
      %v1370 = vpop.permute.xlu0 %1369
      %1371 = vrot.lane.b32.xlu0 %v1202, 112
      %v1372 = vpop.permute.xlu0 %1371
      %1373 = vrot.lane.b32.xlu0 %v1203, 112
      %v1374 = vpop.permute.xlu0 %1373
      %1375 = vrot.lane.b32.xlu0 %v1204, 112
      %v1376 = vpop.permute.xlu0 %1375
      %v1377 = vsel %vm577, %v1354, %v1356
      %v1378 = vsel %vm577, %v1356, %v1358
      %v1379 = vsel %vm577, %v1360, %v1362
      %v1380 = vsel %vm577, %v1362, %v1364
      %v1381 = vsel %vm577, %v1366, %v1368
      %v1382 = vsel %vm577, %v1368, %v1370
      %v1383 = vsel %vm577, %v1372, %v1374
      %v1384 = vsel %vm577, %v1374, %v1376
      %1393 = vrot.lane.b32.xlu0 %v1165, 111
      %v1394 = vpop.permute.xlu0 %1393
      %1395 = vrot.lane.b32.xlu0 %v1149, 111
      %v1396 = vpop.permute.xlu0 %1395
      %1397 = vrot.lane.b32.xlu0 %v1169, 111
      %v1398 = vpop.permute.xlu0 %1397
      %1399 = vrot.lane.b32.xlu0 %v1166, 111
      %v1400 = vpop.permute.xlu0 %1399
      %1401 = vrot.lane.b32.xlu0 %v1150, 111
      %v1402 = vpop.permute.xlu0 %1401
      %1403 = vrot.lane.b32.xlu0 %v1170, 111
      %v1404 = vpop.permute.xlu0 %1403
      %1405 = vrot.lane.b32.xlu0 %v1167, 111
      %v1406 = vpop.permute.xlu0 %1405
      %1407 = vrot.lane.b32.xlu0 %v1151, 111
      %v1408 = vpop.permute.xlu0 %1407
      %1409 = vrot.lane.b32.xlu0 %v1171, 111
      %v1410 = vpop.permute.xlu0 %1409
      %1411 = vrot.lane.b32.xlu0 %v1168, 111
      %v1412 = vpop.permute.xlu0 %1411
      %1413 = vrot.lane.b32.xlu0 %v1152, 111
      %v1414 = vpop.permute.xlu0 %1413
      %1415 = vrot.lane.b32.xlu0 %v1172, 111
      %v1416 = vpop.permute.xlu0 %1415
      %v1417 = vsel %vm618, %v1394, %v1396
      %v1418 = vsel %vm618, %v1396, %v1398
      %v1419 = vsel %vm618, %v1400, %v1402
      %v1420 = vsel %vm618, %v1402, %v1404
      %v1421 = vsel %vm618, %v1406, %v1408
      %v1422 = vsel %vm618, %v1408, %v1410
      %v1423 = vsel %vm618, %v1412, %v1414
      %v1424 = vsel %vm618, %v1414, %v1416
      %1445 = vrot.lane.b32.xlu0 %v1205, 110
      %v1446 = vpop.permute.xlu0 %1445
      %1447 = vrot.lane.b32.xlu0 %v1206, 110
      %v1448 = vpop.permute.xlu0 %1447
      %1449 = vrot.lane.b32.xlu0 %v1207, 110
      %v1450 = vpop.permute.xlu0 %1449
      %1451 = vrot.lane.b32.xlu0 %v1208, 110
      %v1452 = vpop.permute.xlu0 %1451
      %1453 = vrot.lane.b32.xlu0 %v1209, 110
      %v1454 = vpop.permute.xlu0 %1453
      %1455 = vrot.lane.b32.xlu0 %v1210, 110
      %v1456 = vpop.permute.xlu0 %1455
      %1457 = vrot.lane.b32.xlu0 %v1211, 110
      %v1458 = vpop.permute.xlu0 %1457
      %1459 = vrot.lane.b32.xlu0 %v1212, 110
      %v1460 = vpop.permute.xlu0 %1459
      %1461 = vrot.lane.b32.xlu0 %v1213, 110
      %v1462 = vpop.permute.xlu0 %1461
      %1463 = vrot.lane.b32.xlu0 %v1214, 110
      %v1464 = vpop.permute.xlu0 %1463
      %1465 = vrot.lane.b32.xlu0 %v1215, 110
      %v1466 = vpop.permute.xlu0 %1465
      %1467 = vrot.lane.b32.xlu0 %v1216, 110
      %v1468 = vpop.permute.xlu0 %1467
      %v1469 = vsel %vm671, %v1446, %v1448
      %v1470 = vsel %vm671, %v1448, %v1450
      %v1471 = vsel %vm671, %v1452, %v1454
      %v1472 = vsel %vm671, %v1454, %v1456
      %v1473 = vsel %vm671, %v1458, %v1460
      %v1474 = vsel %vm671, %v1460, %v1462
      %v1475 = vsel %vm671, %v1464, %v1466
      %v1476 = vsel %vm671, %v1466, %v1468
      %1497 = vrot.lane.b32.xlu0 %v1217, 96
      %v1498 = vpop.permute.xlu0 %1497
      %1499 = vrot.lane.b32.xlu0 %v1218, 96
      %v1500 = vpop.permute.xlu0 %1499
      %1501 = vrot.lane.b32.xlu0 %v1219, 96
      %v1502 = vpop.permute.xlu0 %1501
      %1503 = vrot.lane.b32.xlu0 %v1220, 96
      %v1504 = vpop.permute.xlu0 %1503
      %1505 = vrot.lane.b32.xlu0 %v1221, 96
      %v1506 = vpop.permute.xlu0 %1505
      %1507 = vrot.lane.b32.xlu0 %v1222, 96
      %v1508 = vpop.permute.xlu0 %1507
      %1509 = vrot.lane.b32.xlu0 %v1223, 96
      %v1510 = vpop.permute.xlu0 %1509
      %1511 = vrot.lane.b32.xlu0 %v1224, 96
      %v1512 = vpop.permute.xlu0 %1511
      %1513 = vrot.lane.b32.xlu0 %v1225, 96
      %v1514 = vpop.permute.xlu0 %1513
      %1515 = vrot.lane.b32.xlu0 %v1226, 96
      %v1516 = vpop.permute.xlu0 %1515
      %1517 = vrot.lane.b32.xlu0 %v1227, 96
      %v1518 = vpop.permute.xlu0 %1517
      %1519 = vrot.lane.b32.xlu0 %v1228, 96
      %v1520 = vpop.permute.xlu0 %1519
      %v1521 = vsel %vm724, %v1498, %v1500
      %v1522 = vsel %vm724, %v1500, %v1502
      %v1523 = vsel %vm724, %v1504, %v1506
      %v1524 = vsel %vm724, %v1506, %v1508
      %v1525 = vsel %vm724, %v1510, %v1512
      %v1526 = vsel %vm724, %v1512, %v1514
      %v1527 = vsel %vm724, %v1516, %v1518
      %v1528 = vsel %vm724, %v1518, %v1520
      %1537 = vrot.lane.b32.xlu0 %v1165, 95
      %v1538 = vpop.permute.xlu0 %1537
      %1539 = vrot.lane.b32.xlu0 %v1149, 95
      %v1540 = vpop.permute.xlu0 %1539
      %1541 = vrot.lane.b32.xlu0 %v1169, 95
      %v1542 = vpop.permute.xlu0 %1541
      %1543 = vrot.lane.b32.xlu0 %v1166, 95
      %v1544 = vpop.permute.xlu0 %1543
      %1545 = vrot.lane.b32.xlu0 %v1150, 95
      %v1546 = vpop.permute.xlu0 %1545
      %1547 = vrot.lane.b32.xlu0 %v1170, 95
      %v1548 = vpop.permute.xlu0 %1547
      %1549 = vrot.lane.b32.xlu0 %v1167, 95
      %v1550 = vpop.permute.xlu0 %1549
      %1551 = vrot.lane.b32.xlu0 %v1151, 95
      %v1552 = vpop.permute.xlu0 %1551
      %1553 = vrot.lane.b32.xlu0 %v1171, 95
      %v1554 = vpop.permute.xlu0 %1553
      %1555 = vrot.lane.b32.xlu0 %v1168, 95
      %v1556 = vpop.permute.xlu0 %1555
      %1557 = vrot.lane.b32.xlu0 %v1152, 95
      %v1558 = vpop.permute.xlu0 %1557
      %1559 = vrot.lane.b32.xlu0 %v1172, 95
      %v1560 = vpop.permute.xlu0 %1559
      %v1561 = vsel %vm765, %v1538, %v1540
      %v1562 = vsel %vm765, %v1540, %v1542
      %v1563 = vsel %vm765, %v1544, %v1546
      %v1564 = vsel %vm765, %v1546, %v1548
      %v1565 = vsel %vm765, %v1550, %v1552
      %v1566 = vsel %vm765, %v1552, %v1554
      %v1567 = vsel %vm765, %v1556, %v1558
      %v1568 = vsel %vm765, %v1558, %v1560
      %1589 = vrot.lane.b32.xlu0 %v1229, 94
      %v1590 = vpop.permute.xlu0 %1589
      %1591 = vrot.lane.b32.xlu0 %v1230, 94
      %v1592 = vpop.permute.xlu0 %1591
      %1593 = vrot.lane.b32.xlu0 %v1231, 94
      %v1594 = vpop.permute.xlu0 %1593
      %1595 = vrot.lane.b32.xlu0 %v1232, 94
      %v1596 = vpop.permute.xlu0 %1595
      %1597 = vrot.lane.b32.xlu0 %v1233, 94
      %v1598 = vpop.permute.xlu0 %1597
      %1599 = vrot.lane.b32.xlu0 %v1234, 94
      %v1600 = vpop.permute.xlu0 %1599
      %1601 = vrot.lane.b32.xlu0 %v1235, 94
      %v1602 = vpop.permute.xlu0 %1601
      %1603 = vrot.lane.b32.xlu0 %v1236, 94
      %v1604 = vpop.permute.xlu0 %1603
      %1605 = vrot.lane.b32.xlu0 %v1237, 94
      %v1606 = vpop.permute.xlu0 %1605
      %1607 = vrot.lane.b32.xlu0 %v1238, 94
      %v1608 = vpop.permute.xlu0 %1607
      %1609 = vrot.lane.b32.xlu0 %v1239, 94
      %v1610 = vpop.permute.xlu0 %1609
      %1611 = vrot.lane.b32.xlu0 %v1240, 94
      %v1612 = vpop.permute.xlu0 %1611
      %v1613 = vsel %vm818, %v1590, %v1592
      %v1614 = vsel %vm818, %v1592, %v1594
      %v1615 = vsel %vm818, %v1596, %v1598
      %v1616 = vsel %vm818, %v1598, %v1600
      %v1617 = vsel %vm818, %v1602, %v1604
      %v1618 = vsel %vm818, %v1604, %v1606
      %v1619 = vsel %vm818, %v1608, %v1610
      %v1620 = vsel %vm818, %v1610, %v1612
      %v1629 = vpack.c.bf16 %v1175, %v1173
      %v1630 = vpack.c.bf16 %v1176, %v1174
      %v1631 = vpack.c.bf16 %v1179, %v1177
      %v1632 = vpack.c.bf16 %v1180, %v1178
      %v1633 = vpack.c.bf16 %v1275, %v1273
      %v1634 = vpack.c.bf16 %v1276, %v1274
      %v1635 = vpack.c.bf16 %v1279, %v1277
      %v1636 = vpack.c.bf16 %v1280, %v1278
      %v1637 = vpack.c.bf16 %v1327, %v1325
      %v1638 = vpack.c.bf16 %v1328, %v1326
      %v1639 = vpack.c.bf16 %v1331, %v1329
      %v1640 = vpack.c.bf16 %v1332, %v1330
      %v1641 = vpack.c.bf16 %v1379, %v1377
      %v1642 = vpack.c.bf16 %v1380, %v1378
      %v1643 = vpack.c.bf16 %v1383, %v1381
      %v1644 = vpack.c.bf16 %v1384, %v1382
      %v1645 = vpack.c.bf16 %v1419, %v1417
      %v1646 = vpack.c.bf16 %v1420, %v1418
      %v1647 = vpack.c.bf16 %v1423, %v1421
      %v1648 = vpack.c.bf16 %v1424, %v1422
      %v1649 = vpack.c.bf16 %v1471, %v1469
      %v1650 = vpack.c.bf16 %v1472, %v1470
      %v1651 = vpack.c.bf16 %v1475, %v1473
      %v1652 = vpack.c.bf16 %v1476, %v1474
      %v1653 = vpack.c.bf16 %v1523, %v1521
      %v1654 = vpack.c.bf16 %v1524, %v1522
      %v1655 = vpack.c.bf16 %v1527, %v1525
      %v1656 = vpack.c.bf16 %v1528, %v1526
      %v1657 = vpack.c.bf16 %v1563, %v1561
      %v1658 = vpack.c.bf16 %v1564, %v1562
      %v1659 = vpack.c.bf16 %v1567, %v1565
      %v1660 = vpack.c.bf16 %v1568, %v1566
      %v1661 = vpack.c.bf16 %v1615, %v1613
      %v1662 = vpack.c.bf16 %v1616, %v1614
      %v1663 = vpack.c.bf16 %v1619, %v1617
      %v1664 = vpack.c.bf16 %v1620, %v1618
      %v1665 = vld [vmem:[%s3] sm:$0xff]
      %v1666 = vld [vmem:[%s3 + $0x8] sm:$0xf]
      %v1667 = vld [vmem:[%s3 + $0xc] sm:$0xff]
      %v1668 = vld [vmem:[%s3 + $0x14] sm:$0xf]
      %v1669 = vld [vmem:[%s3 + $0x18] sm:$0xff]
      %v1670 = vld [vmem:[%s3 + $0x20] sm:$0xf]
      %v1671 = vld [vmem:[%s3 + $0x24] sm:$0xff]
      %v1672 = vld [vmem:[%s3 + $0x2c] sm:$0xf]
      %v1673 = vld [vmem:[%s4] sm:$0xff]
      %v1674 = vld [vmem:[%s4 + $0x8] sm:$0xff]
      %v1675 = vld [vmem:[%s4 + $0x10] sm:$0xff]
      %v1676 = vld [vmem:[%s4 + $0x18] sm:$0xff]
      %1678 = vset.pattern.permute.xlu0 0
      %1679 = vperm.xlu0 %1678, %v1673
      %v1680 = vpop.permute.xlu0 %1679
      %1683 = vset.pattern.permute.xlu0 0
      %1684 = vperm.xlu0 %1683, %v1674
      %v1685 = vpop.permute.xlu0 %1684
      %1688 = vset.pattern.permute.xlu0 0
      %1689 = vperm.xlu0 %1688, %v1675
      %v1690 = vpop.permute.xlu0 %1689
      %1693 = vset.pattern.permute.xlu0 0
      %1694 = vperm.xlu0 %1693, %v1676
      %v1695 = vpop.permute.xlu0 %1694
      %v1705 = vunpack.c.l.b16 %v1665
      %v1706 = vunpack.c.h.b16 %v1665
      %v1707 = vunpack.c.l.b16 %v1666
      %v1708 = vunpack.c.l.b16 %v1667
      %v1709 = vunpack.c.h.b16 %v1667
      %v1710 = vunpack.c.l.b16 %v1668
      %v1711 = vunpack.c.l.b16 %v1669
      %v1712 = vunpack.c.h.b16 %v1669
      %v1713 = vunpack.c.l.b16 %v1670
      %v1714 = vunpack.c.l.b16 %v1671
      %v1715 = vunpack.c.h.b16 %v1671
      %v1716 = vunpack.c.l.b16 %v1672
      %v1717 = vpack.c.b16 %v1708, %v1705
      %v1718 = vpack.c.b16 %v1709, %v1706
      %v1719 = vpack.c.b16 %v1710, %v1707
      %v1720 = vpack.c.b16 %v1714, %v1711
      %v1721 = vpack.c.b16 %v1715, %v1712
      %v1722 = vpack.c.b16 %v1716, %v1713
      %v1728 = vsel %vm401, %v1719, 0
      %v1731 = vsel %vm401, %v1722, 0
      %1733 = vmatprep.subr.bf16.mxu0 %v1630
      %1734 = vmatpush1.bf16.msra.mxu0 %v1629
      %1735 = vmatprep.subr.bf16.mxu0 %v1632
      %1736 = vmatpush1.bf16.msra.mxu0 %v1631
      %1737 = vmatprep.subr.bf16.mxu0 %v1634
      %1738 = vmatpush1.bf16.msra.mxu0 %v1633
      %1739 = vmatprep.subr.bf16.mxu0 %v1636
      %1740 = vmatpush1.bf16.msra.mxu0 %v1635
      %1741 = vmatprep.subr.bf16.mxu0 %v1638
      %1742 = vmatpush1.bf16.msra.mxu0 %v1637
      %1743 = vmatprep.subr.bf16.mxu0 %v1640
      %1744 = vmatpush1.bf16.msra.mxu0 %v1639
      %1745 = vmatprep.subr.bf16.mxu0 %v1642
      %1746 = vmatpush1.bf16.msra.mxu0 %v1641
      %1747 = vmatprep.subr.bf16.mxu0 %v1644
      %1748 = vmatpush1.bf16.msra.mxu0 %v1643
      %1749 = vmatprep.subr.bf16.mxu0 %v1646
      %1750 = vmatpush1.bf16.msra.mxu0 %v1645
      %1751 = vmatprep.subr.bf16.mxu0 %v1648
      %1752 = vmatpush1.bf16.msra.mxu0 %v1647
      %1753 = vmatprep.subr.bf16.mxu0 %v1650
      %1754 = vmatpush1.bf16.msra.mxu0 %v1649
      %1755 = vmatprep.subr.bf16.mxu0 %v1652
      %1756 = vmatpush1.bf16.msra.mxu0 %v1651
      %1757 = vmatprep.subr.bf16.mxu0 %v1654
      %1758 = vmatpush1.bf16.msra.mxu0 %v1653
      %1759 = vmatprep.subr.bf16.mxu0 %v1656
      %1760 = vmatpush1.bf16.msra.mxu0 %v1655
      %1761 = vmatprep.subr.bf16.mxu0 %v1658
      %1762 = vmatpush1.bf16.msra.mxu0 %v1657
      %1763 = vmatprep.subr.bf16.mxu0 %v1660
      %1764 = vmatpush1.bf16.msra.mxu0 %v1659
      %1765 = vmatprep.mubr.bf16.mxu0 %v1718
      %1766 = vmatmul.mubr.bf16.gmra.mrb[0].mxu0 %v1717
      %v1767 = vpop.f32.mrb[0].mxu0
      %v1768 = vadd.f32 %v1680, %v1767
      %v1769 = vpop.f32.mrb[0].mxu0
      %v1770 = vadd.f32 %v1680, %v1769
      %v1771 = vpop.f32.mrb[0].mxu0
      %v1772 = vadd.f32 %v1685, %v1771
      %v1773 = vpop.f32.mrb[0].mxu0
      %v1774 = vadd.f32 %v1685, %v1773
      %1775 = vmatprep.mubr.bf16.mxu0 %v1721
      %1776 = vmatmul.mubr.bf16.gmra.mrb[0].mxu0 %v1720
      %v1777 = vpop.f32.mrb[0].mxu0
      %v1778 = vadd.f32 %v1690, %v1777
      %v1779 = vpop.f32.mrb[0].mxu0
      %v1780 = vadd.f32 %v1690, %v1779
      %v1781 = vpop.f32.mrb[0].mxu0
      %v1782 = vadd.f32 %v1695, %v1781
      %v1783 = vpop.f32.mrb[0].mxu0
      %v1784 = vadd.f32 %v1695, %v1783
      %1785 = vdwg.mxu0
      %1786 = vmatprep.subr.bf16.mxu0 %v1662
      %1787 = vmatpush1.bf16.msra.mxu0 %v1661
      %1788 = vmatprep.subr.bf16.mxu0 %v1664
      %1789 = vmatpush1.bf16.msra.mxu0 %v1663
      %1790 = vmatprep.subr.bf16.mxu0 0
      %1791 = vmatpush1.bf16.msra.mxu0 0
      %1792 = vmatprep.subr.bf16.mxu0 0
      %1793 = vmatpush1.bf16.msra.mxu0 0
      %1794 = vmatprep.subr.bf16.mxu0 0
      %1795 = vmatpush1.bf16.msra.mxu0 0
      %1796 = vmatprep.subr.bf16.mxu0 0
      %1797 = vmatpush1.bf16.msra.mxu0 0
      %1798 = vmatprep.subr.bf16.mxu0 0
      %1799 = vmatpush1.bf16.msra.mxu0 0
      %1800 = vmatprep.subr.bf16.mxu0 0
      %1801 = vmatpush1.bf16.msra.mxu0 0
      %1802 = vmatprep.subr.bf16.mxu0 0
      %1803 = vmatpush1.bf16.msra.mxu0 0
      %1804 = vmatprep.subr.bf16.mxu0 0
      %1805 = vmatpush1.bf16.msra.mxu0 0
      %1806 = vmatprep.subr.bf16.mxu0 0
      %1807 = vmatpush1.bf16.msra.mxu0 0
      %1808 = vmatprep.subr.bf16.mxu0 0
      %1809 = vmatpush1.bf16.msra.mxu0 0
      %1810 = vmatprep.subr.bf16.mxu0 0
      %1811 = vmatpush1.bf16.msra.mxu0 0
      %1812 = vmatprep.subr.bf16.mxu0 0
      %1813 = vmatpush1.bf16.msra.mxu0 0
      %1814 = vmatprep.subr.bf16.mxu0 0
      %1815 = vmatpush1.bf16.msra.mxu0 0
      %1816 = vmatprep.subr.bf16.mxu0 0
      %1817 = vmatpush1.bf16.msra.mxu0 0
      %1818 = vmatprep.mubr.bf16.mxu0 0
      %1819 = vmatmul.mubr.bf16.gmra.mrb[0].mxu0 %v1728
      %v1820 = vpop.f32.mrb[0].mxu0
      %v1821 = vadd.f32 %v1768, %v1820
      %v1822 = vpop.f32.mrb[0].mxu0
      %v1823 = vadd.f32 %v1770, %v1822
      %v1824 = vpop.f32.mrb[0].mxu0
      %v1825 = vadd.f32 %v1772, %v1824
      %v1826 = vpop.f32.mrb[0].mxu0
      %v1827 = vadd.f32 %v1774, %v1826
      %1828 = vmatprep.mubr.bf16.mxu0 0
      %1829 = vmatmul.mubr.bf16.gmra.mrb[0].mxu0 %v1731
      %v1830 = vpop.f32.mrb[0].mxu0
      %v1831 = vadd.f32 %v1778, %v1830
      %v1832 = vpop.f32.mrb[0].mxu0
      %v1833 = vadd.f32 %v1780, %v1832
      %v1834 = vpop.f32.mrb[0].mxu0
      %v1835 = vadd.f32 %v1782, %v1834
      %v1836 = vpop.f32.mrb[0].mxu0
      %v1837 = vadd.f32 %v1784, %v1836
      %1838 = vdwg.mxu0
      %v1839 = vadd.f32 %v1821, %v1823
      %1840 = vadd.xlane.f32.xlu0 %v1839
      %v1841 = vpop.xlane.xlu0 %1840
      %v1842 = vadd.f32 %v1825, %v1827
      %1843 = vadd.xlane.f32.xlu0 %v1842
      %v1844 = vpop.xlane.xlu0 %1843
      %v1845 = vadd.f32 %v1831, %v1833
      %1846 = vadd.xlane.f32.xlu0 %v1845
      %v1847 = vpop.xlane.xlu0 %1846
      %v1848 = vadd.f32 %v1835, %v1837
      %1849 = vadd.xlane.f32.xlu0 %v1848
      %v1850 = vpop.xlane.xlu0 %1849
      %v1851 = vmul.f32 %v1841, 0.00390625
      %v1852 = vmul.f32 %v1844, 0.00390625
      %v1853 = vmul.f32 %v1847, 0.00390625
      %v1854 = vmul.f32 %v1850, 0.00390625
      %v1855 = vmul.f32 %v1821, %v1821
      %v1856 = vmul.f32 %v1823, %v1823
      %v1857 = vmul.f32 %v1825, %v1825
      %v1858 = vmul.f32 %v1827, %v1827
      %v1859 = vmul.f32 %v1831, %v1831
      %v1860 = vmul.f32 %v1833, %v1833
      %v1861 = vmul.f32 %v1835, %v1835
      %v1862 = vmul.f32 %v1837, %v1837
      %v1863 = vadd.f32 %v1855, %v1856
      %1864 = vadd.xlane.f32.xlu0 %v1863
      %v1865 = vpop.xlane.xlu0 %1864
      %v1866 = vadd.f32 %v1857, %v1858
      %1867 = vadd.xlane.f32.xlu0 %v1866
      %v1868 = vpop.xlane.xlu0 %1867
      %v1869 = vadd.f32 %v1859, %v1860
      %1870 = vadd.xlane.f32.xlu0 %v1869
      %v1871 = vpop.xlane.xlu0 %1870
      %v1872 = vadd.f32 %v1861, %v1862
      %1873 = vadd.xlane.f32.xlu0 %v1872
      %v1874 = vpop.xlane.xlu0 %1873
      %v1875 = vmul.f32 %v1865, 0.00390625
      %v1876 = vmul.f32 %v1868, 0.00390625
      %v1877 = vmul.f32 %v1871, 0.00390625
      %v1878 = vmul.f32 %v1874, 0.00390625
      %v1879 = vmul.f32 %v1851, %v1851
      %v1880 = vmul.f32 %v1852, %v1852
      %v1881 = vmul.f32 %v1853, %v1853
      %v1882 = vmul.f32 %v1854, %v1854
      %v1883 = vsub.f32 %v1875, %v1879
      %v1884 = vsub.f32 %v1876, %v1880
      %v1885 = vsub.f32 %v1877, %v1881
      %v1886 = vsub.f32 %v1878, %v1882
      %v1887 = vsub.f32 %v1821, %v1851
      %v1888 = vsub.f32 %v1823, %v1851
      %v1889 = vsub.f32 %v1825, %v1852
      %v1890 = vsub.f32 %v1827, %v1852
      %v1891 = vsub.f32 %v1831, %v1853
      %v1892 = vsub.f32 %v1833, %v1853
      %v1893 = vsub.f32 %v1835, %v1854
      %v1894 = vsub.f32 %v1837, %v1854
      %v1895 = vadd.f32 %v1883, 1e-05
      %v1896 = vadd.f32 %v1884, 1e-05
      %v1897 = vadd.f32 %v1885, 1e-05
      %v1898 = vadd.f32 %v1886, 1e-05
      %v1899 = vrsqrt.pop %v1895
      %v1900 = vrsqrt.pop %v1896
      %v1901 = vrsqrt.pop %v1897
      %v1902 = vrsqrt.pop %v1898
      %v1903 = vmul.f32 %v1887, %v1899
      %v1904 = vmul.f32 %v1888, %v1899
      %v1905 = vmul.f32 %v1889, %v1900
      %v1906 = vmul.f32 %v1890, %v1900
      %v1907 = vmul.f32 %v1891, %v1901
      %v1908 = vmul.f32 %v1892, %v1901
      %v1909 = vmul.f32 %v1893, %v1902
      %v1910 = vmul.f32 %v1894, %v1902
      %v1911 = vadd.f32 %v1903, %v265
      %v1912 = vadd.f32 %v1904, %v266
      %v1913 = vadd.f32 %v1905, %v267
      %v1914 = vadd.f32 %v1906, %v268
      %v1915 = vadd.f32 %v1907, %v269
      %v1916 = vadd.f32 %v1908, %v270
      %v1917 = vadd.f32 %v1909, %v271
      %v1918 = vadd.f32 %v1910, %v272
      %1919 = vst [vmem:[%s224] sm:$0xff] %v1911
      %1920 = vst [vmem:[%s224 + $0x8] sm:$0xff] %v1912
      %1921 = vst [vmem:[%s224 + $0x10] sm:$0xff] %v1913
      %1922 = vst [vmem:[%s224 + $0x18] sm:$0xff] %v1914
      %1923 = vst [vmem:[%s224 + $0x20] sm:$0xff] %v1915
      %1924 = vst [vmem:[%s224 + $0x28] sm:$0xff] %v1916
      %1925 = vst [vmem:[%s224 + $0x30] sm:$0xff] %v1917
      %1926 = vst [vmem:[%s224 + $0x38] sm:$0xff] %v1918
      %p1927 = scmp.lt.s32.totalorder %s16, 1
      %s1928 = scalar_select %p1927, %s16, 1
      %s1929 = smul.addr %s1928, 8
      %s1930 = smul.addr %s1929, 8
      %s1931 = scalar_lea.vmem %s5, %s1930
      // Predicated region
      $region41: #{res_block.1} parent=39 // pred_check
        %p1932 = pneg %p144
      $region42: #{res_block.1} parent=39 // pred_check_branch
        %1934 = sbr.rel (%p1932) target = $region44
      $region43: #{res_block.1} parent=39 // pred_region
        _
      $region44: #{res_block.1} parent=39 // pred_fallthru
        _
    $region40: #{res_block.1} parent=5 // pred_fallthru
      _
    %p1935 = scmp.le.s32.totalorder 2, %s11
    // Predicated region
    $region45: #{res_block.1} parent=5 // pred_check
      %p1936 = pneg %p1935
    $region46: #{res_block.1} parent=5 // pred_check_branch
      %1938 = sbr.rel (%p1936) target = $region48
    $region47: #{res_block.1} parent=5 // pred_region
      %s1939 = ssub.s32 %s11, 2
      // Predicated region
      $region49: #{res_block.1} parent=47 // pred_check
        %p1940 = pneg %p150
      $region50: #{res_block.1} parent=47 // pred_check_branch
        %1942 = sbr.rel (%p1940) target = $region52
      $region51: #{res_block.1} parent=47 // pred_region
        %p1943 = scmp.lt.s32.totalorder %s17, 1
        %s1944 = scalar_select %p1943, %s17, 1
        %s1945 = smul.addr %s1944, 8
        %s1946 = smul.addr %s1945, 8
        %s1947 = scalar_lea.vmem %s5, %s1946
      $region52: #{res_block.1} parent=47 // pred_fallthru
        _
    $region48: #{res_block.1} parent=5 // pred_fallthru
      _
  $region6: #{res_block.1} parent=0 // loop_footer
    %s15 = sadd.s32 1, %s11
  $region7: #{res_block.1} parent=0 // loop_footer_branch
    %10 = sbr.rel target = $region3
  $region8: #{res_block.1} parent=0 // loop_exit
    _

</llo_original>
